<compile_context>
chip_gen: v5e
topology: v5e:2x2
jax: 0.10.0
libtpu: 0.0.40
codegen_flags: <defaults>
</compile_context>

<pallas_src>
import functools
import math

import jax
import jax.numpy as jnp
from jax import lax
from jax.experimental import pallas as pl
from jax.experimental.pallas import tpu as pltpu

STAGE_NUM = 3


def _emau_kernel(x_ref, mu0t_ref, w1a_ref, b1a_ref, w2_ref, b2_ref,
                 out_x_ref, out_mu_ref, *, stage_num, exp_in_bf16):
    """Per-image EMAU forward in channels-first layout.

    x_ref     : (C, N)    f32  input pixels (N = H*W on the lane axis)
    mu0t_ref  : (K, C)    bf16 initial bases, transposed
    w1a_ref   : (C+1, C)  bf16 conv1 weight with an extra zero row appended
    b1a_ref   : (C+1, 1)  f32  conv1 bias with an extra 1.0 appended
    w2_ref    : (C, C)    bf16 conv2 weight with eval-mode BN folded in
    b2_ref    : (C, 1)    f32  folded BN shift
    out_x_ref : (C, N)    bf16 output feature map
    out_mu_ref: (C, K)    f32  final bases
    """
    f32 = jnp.float32
    bf16 = jnp.bfloat16
    c = out_mu_ref.shape[0]

    # conv1 (1x1 + bias): bf16 MXU operands, f32 accumulation.  The augmented
    # zero-weight / unit-bias row makes row C an all-ones pixel row, which the
    # M-step matmul reuses to produce colsum for free.
    xc_aug = jnp.dot(w1a_ref[...], x_ref[...].astype(bf16),
                     preferred_element_type=f32) + b1a_ref[...]        # (C+1, N)
    xc_aug_bf = xc_aug.astype(bf16)                                    # loop-invariant
    xc_bf = xc_aug_bf[:c, :]                                           # (C, N)

    mu_t_bf = mu0t_ref[...]                                            # (K, C) bf16
    mu_t = None
    z_bf = None
    for _ in range(stage_num):
        # E-step: logits^T = mu^T @ xc : (K, N).  Softmax over K (sublane axis),
        # so sub / exp / mul operate on lane-dense vregs.
        logits = jnp.dot(mu_t_bf, xc_bf, preferred_element_type=f32)   # (K, N)
        logits = logits - jnp.max(logits, axis=0, keepdims=True)
        if exp_in_bf16:
            e = jnp.exp(logits.astype(bf16))                           # bf16 EUP (v6e/v7x)
            denom = jnp.sum(e.astype(f32), axis=0, keepdims=True)      # f32 row-sum
        else:
            e = jnp.exp(logits)                                        # f32 EUP (v5e)
            denom = jnp.sum(e, axis=0, keepdims=True)
        z_bf = (e * pl.reciprocal(denom, approx=True).astype(e.dtype)
                ).astype(bf16)                                         # (K, N)

        # M-step with fused colsum:
        #   [mu_raw^T | colsum^T] = z^T @ [xc ; ones]^T  : (K, C+1)
        mu_t_aug = lax.dot_general(z_bf, xc_aug_bf, (((1,), (1,)), ((), ())),
                                   preferred_element_type=f32)         # (K, C+1)
        colsum = mu_t_aug[:, c:c + 1]                                  # (K, 1)
        mu_t = mu_t_aug[:, :c] * pl.reciprocal(1e-6 + colsum, approx=True)

        # L2-normalize each basis over channels (tiny (K, C) tensor).
        sumsq = jnp.sum(mu_t * mu_t, axis=1, keepdims=True)            # (K, 1)
        mu_t = mu_t * lax.rsqrt(sumsq + 1e-12)
        mu_t_bf = mu_t.astype(bf16)

    mu = jnp.transpose(mu_t)                                           # (C, K) f32, tiny

    # Reconstruction: x_rec = mu @ z^T -> (C, N); ReLU.
    x_rec = jnp.dot(mu.astype(bf16), z_bf, preferred_element_type=f32)
    x_rec = jnp.maximum(x_rec, 0.0)

    # conv2 (1x1, BN folded) + residual + ReLU; lane-dense bf16 store.
    y = jnp.dot(w2_ref[...], x_rec.astype(bf16),
                preferred_element_type=f32) + b2_ref[...]              # (C, N)
    y = jnp.maximum(y + x_ref[...], 0.0)
    out_x_ref[...] = y.astype(out_x_ref.dtype)
    out_mu_ref[...] = mu


def _vmem_limit_bytes():
    try:
        cap = int(pltpu.get_tpu_info().vmem_capacity_bytes)
    except Exception:
        cap = 64 * 1024 * 1024
    # ~96 MiB on 128-MiB-VMEM chips (v5e/v6e), ~48 MiB on v7x (64 MiB physical).
    return min(100 * 1024 * 1024, (cap * 3) // 4)


def _has_bf16_eup():
    # v6e / v7x run exp at ~2x throughput in bf16; v5e and older have no bf16
    # VPU/EUP, so the bf16 cast would only add work there.
    try:
        kind = jax.devices()[0].device_kind.lower()
    except Exception:
        return False
    return not any(tag in kind for tag in ("v2", "v3", "v4", "v5"))


def emau_forward(x_nchw, mu0, w1, b1, w2, bn_gamma, bn_beta, bn_mean, bn_var,
                 bn_eps=1e-5):
    """EMAU forward. x_nchw: (B, C, H, W) f32. Returns (y_nchw [bf16], mu [f32])."""
    b, c, h, w = x_nchw.shape
    n = h * w
    k = mu0.shape[-1]

    # Channels-first slab: pure reshape, no HBM layout pass.
    x_bcn = x_nchw.reshape(b, c, n).astype(jnp.float32)

    # Fold eval-mode BatchNorm into conv2.
    # TODO(synk): training-mode BN (batch statistics) is not implemented.
    bn_scale = bn_gamma / jnp.sqrt(bn_var + bn_eps)
    bn_shift = bn_beta - bn_mean * bn_scale
    w2_eff = (w2 * bn_scale[:, None]).astype(jnp.bfloat16)             # (C, C)
    b2_col = bn_shift.reshape(c, 1).astype(jnp.float32)

    # conv1 augmented with a zero weight row + unit bias => xc carries an
    # all-ones pixel row, letting the kernel fuse colsum into the M-step matmul.
    w1_aug = jnp.concatenate([w1, jnp.zeros((1, c), w1.dtype)],
                             axis=0).astype(jnp.bfloat16)              # (C+1, C)
    b1_aug = jnp.concatenate([b1, jnp.ones((1,), b1.dtype)]
                             ).reshape(c + 1, 1).astype(jnp.float32)
    mu0_t = jnp.transpose(mu0).astype(jnp.bfloat16)                    # (K, C)

    kernel = functools.partial(_emau_kernel, stage_num=STAGE_NUM,
                               exp_in_bf16=_has_bf16_eup())

    # Advisory cost estimate (conv1 + EM stages + reconstruction + conv2).
    flops = int(2 * b * n * ((c + 1) * c + STAGE_NUM * k * (2 * c + 1)
                             + c * k + c * c))
    transcendentals = int(b * STAGE_NUM * n * k)
    bytes_accessed = int(b * n * c * (4 + 2) + b * c * k * 4
                         + 2 * ((c + 1) * c + c * c + k * c)
                         + 4 * (2 * c + 1))

    out_x, out_mu = pl.pallas_call(
        kernel,
        out_shape=(
            jax.ShapeDtypeStruct((b, c, n), jnp.bfloat16),
            jax.ShapeDtypeStruct((b, c, k), jnp.float32),
        ),
        grid_spec=pltpu.PrefetchScalarGridSpec(
            num_scalar_prefetch=0,
            grid=(b,),
            in_specs=[
                pl.BlockSpec((None, c, n), lambda i: (i, 0, 0)),   # x (per image)
                pl.BlockSpec((k, c), lambda i: (0, 0)),            # mu0^T (bf16)
                pl.BlockSpec((c + 1, c), lambda i: (0, 0)),        # w1_aug (bf16)
                pl.BlockSpec((c + 1, 1), lambda i: (0, 0)),        # b1_aug
                pl.BlockSpec((c, c), lambda i: (0, 0)),            # w2 (BN folded)
                pl.BlockSpec((c, 1), lambda i: (0, 0)),            # b2 (BN shift)
            ],
            out_specs=[
                pl.BlockSpec((None, c, n), lambda i: (i, 0, 0)),
                pl.BlockSpec((None, c, k), lambda i: (i, 0, 0)),
            ],
        ),
        # One image per grid step; the batch axis is "parallel" so v7x's two
        # TensorCores each take a share when B >= 2.
        # TODO(synk): for realistic EMAU sizes (e.g. N=4096, C=512) on v7x's
        #             64 MiB VMEM, tile the pixel axis with an inner
        #             pltpu.emit_pipeline and accumulate mu_raw/colsum per tile.
        compiler_params=pltpu.CompilerParams(
            dimension_semantics=("parallel",),
            vmem_limit_bytes=_vmem_limit_bytes()),
        cost_estimate=pl.CostEstimate(flops=flops,
                                      transcendentals=transcendentals,
                                      bytes_accessed=bytes_accessed),
    )(x_bcn, mu0_t, w1_aug, b1_aug, w2_eff, b2_col)

    # (B, C, N) -> NCHW is again a pure reshape.
    return out_x.reshape(b, c, h, w), out_mu


def emau_reference(x_nchw, mu0, w1, b1, w2, bn_gamma, bn_beta, bn_mean, bn_var,
                   bn_eps=1e-5):
    """Pure-JAX f32 reference mirroring the PyTorch forward (eval-mode BN)."""
    b, c, h, w = x_nchw.shape
    idn = x_nchw
    x = jnp.einsum('oc,bchw->bohw', w1, x_nchw) + b1[None, :, None, None]
    x = x.reshape(b, c, h * w)                                 # (B, C, N)
    mu = jnp.broadcast_to(mu0[None], (b, c, mu0.shape[-1]))
    z = None
    for _ in range(STAGE_NUM):
        x_t = jnp.transpose(x, (0, 2, 1))                      # (B, N, C)
        z = jnp.einsum('bnc,bck->bnk', x_t, mu)
        z = jax.nn.softmax(z, axis=2)
        z_ = z / (1e-6 + jnp.sum(z, axis=1, keepdims=True))
        mu = jnp.einsum('bcn,bnk->bck', x, z_)
        mu = mu / (1e-6 + jnp.linalg.norm(mu, axis=1, keepdims=True))
    z_t = jnp.transpose(z, (0, 2, 1))                          # (B, K, N)
    x = jnp.einsum('bck,bkn->bcn', mu, z_t).reshape(b, c, h, w)
    x = jnp.maximum(x, 0.0)
    x = jnp.einsum('oc,bchw->bohw', w2, x)
    scale = bn_gamma / jnp.sqrt(bn_var + bn_eps)
    shift = bn_beta - bn_mean * scale
    x = x * scale[None, :, None, None] + shift[None, :, None, None]
    x = x + idn
    x = jnp.maximum(x, 0.0)
    return x, mu


if __name__ == "__main__":
    B, C, H, W, K = 2, 64, 16, 16, 32

    key = jax.random.PRNGKey(0)
    k_mu, k_w1, k_b1, k_w2, k_x = jax.random.split(key, 5)

    # mu: normal(0, sqrt(2/k)), l2-normalized over channel dim.
    mu0 = jax.random.normal(k_mu, (C, K), jnp.float32) * math.sqrt(2.0 / K)
    mu0 = mu0 / (1e-6 + jnp.linalg.norm(mu0, axis=0, keepdims=True))

    # conv weights: normal(0, sqrt(2/n)) with n = 1*1*out_channels.
    w1 = jax.random.normal(k_w1, (C, C), jnp.float32) * math.sqrt(2.0 / C)
    b1 = jax.random.uniform(k_b1, (C,), jnp.float32,
                            -1.0 / math.sqrt(C), 1.0 / math.sqrt(C))
    w2 = jax.random.normal(k_w2, (C, C), jnp.float32) * math.sqrt(2.0 / C)

    # BatchNorm (eval mode, default running stats): gamma=1, beta=0, mean=0, var=1.
    bn_gamma = jnp.ones((C,), jnp.float32)
    bn_beta = jnp.zeros((C,), jnp.float32)
    bn_mean = jnp.zeros((C,), jnp.float32)
    bn_var = jnp.ones((C,), jnp.float32)

    x = jax.random.normal(k_x, (B, C, H, W), jnp.float32)

    y, mu_out = emau_forward(x, mu0, w1, b1, w2,
                             bn_gamma, bn_beta, bn_mean, bn_var)
    jax.block_until_ready((y, mu_out))

    y_ref, mu_ref = emau_reference(x, mu0, w1, b1, w2,
                                   bn_gamma, bn_beta, bn_mean, bn_var)
    err_y = float(jnp.max(jnp.abs(y.astype(jnp.float32) - y_ref)))
    err_mu = float(jnp.max(jnp.abs(mu_out - mu_ref)))
    # Tolerances reflect bf16 MXU operands, approx reciprocals, bf16 exp on
    # v6e/v7x, and the bf16 output store across 3 EM stages vs an exact-f32
    # reference.
    assert err_y < 1e-1 and err_mu < 5e-2, (err_y, err_mu)

    print("KERNEL_OK")
</pallas_src>

<mosaic_0001>
module attributes {stable_mosaic.version = 11 : i64} {
  func.func @_emau_kernel(%arg0: i32, %arg1: memref<1x64x256xf32, #tpu.memory_space<vmem>>, %arg2: memref<32x64xbf16, #tpu.memory_space<vmem>>, %arg3: memref<65x64xbf16, #tpu.memory_space<vmem>>, %arg4: memref<65x1xf32, #tpu.memory_space<vmem>>, %arg5: memref<64x64xbf16, #tpu.memory_space<vmem>>, %arg6: memref<64x1xf32, #tpu.memory_space<vmem>>, %arg7: memref<1x64x256xbf16, #tpu.memory_space<vmem>>, %arg8: memref<1x64x32xf32, #tpu.memory_space<vmem>>) attributes {dimension_semantics = [#tpu.dimension_semantics<parallel>], iteration_bounds = array<i64: 2>, scalar_prefetch = 0 : i64, scratch_operands = 0 : i64, tpu.core_type = #tpu.core_type<tc>, window_params = [{transform_indices = @transform_0, window_bounds = array<i64: 1, 64, 256>}, {pipeline_mode = #tpu.pipeline_mode<synchronous>, transform_indices = @transform_1, window_bounds = array<i64: 32, 64>}, {pipeline_mode = #tpu.pipeline_mode<synchronous>, transform_indices = @transform_2, window_bounds = array<i64: 65, 64>}, {pipeline_mode = #tpu.pipeline_mode<synchronous>, transform_indices = @transform_3, window_bounds = array<i64: 65, 1>}, {pipeline_mode = #tpu.pipeline_mode<synchronous>, transform_indices = @transform_4, window_bounds = array<i64: 64, 64>}, {pipeline_mode = #tpu.pipeline_mode<synchronous>, transform_indices = @transform_5, window_bounds = array<i64: 64, 1>}, {transform_indices = @transform_6, window_bounds = array<i64: 1, 64, 256>}, {transform_indices = @transform_7, window_bounds = array<i64: 1, 64, 32>}]} {
    %c0 = arith.constant 0 : index
    %c0_0 = arith.constant 0 : index
    %0 = vector.load %arg3[%c0, %c0_0] : memref<65x64xbf16, #tpu.memory_space<vmem>>, vector<65x64xbf16>
    %c0_1 = arith.constant 0 : index
    %c0_2 = arith.constant 0 : index
    %c0_3 = arith.constant 0 : index
    %1 = vector.load %arg1[%c0_1, %c0_2, %c0_3] : memref<1x64x256xf32, #tpu.memory_space<vmem>>, vector<1x64x256xf32>
    %2 = vector.shape_cast %1 : vector<1x64x256xf32> to vector<64x256xf32>
    %3 = arith.truncf %2 : vector<64x256xf32> to vector<64x256xbf16>
    %cst = arith.constant dense<0.000000e+00> : vector<65x256xf32>
    %4 = tpu.matmul %0, %3, %cst {dimension_numbers = #tpu.dot_dimension_numbers<[1], [0], [0], [1], [0, 0, 1, 1], [], []>} : vector<65x64xbf16>, vector<64x256xbf16>, vector<65x256xf32> -> vector<65x256xf32>
    %c0_4 = arith.constant 0 : index
    %c0_5 = arith.constant 0 : index
    %5 = vector.load %arg4[%c0_4, %c0_5] : memref<65x1xf32, #tpu.memory_space<vmem>>, vector<65x1xf32>
    %6 = vector.broadcast %5 : vector<65x1xf32> to vector<65x256xf32>
    %7 = arith.addf %4, %6 : vector<65x256xf32>
    %8 = arith.truncf %7 : vector<65x256xf32> to vector<65x256xbf16>
    %9 = vector.extract_strided_slice %8 {offsets = [0, 0], sizes = [64, 256], strides = [1, 1]} : vector<65x256xbf16> to vector<64x256xbf16>
    %c0_6 = arith.constant 0 : index
    %c0_7 = arith.constant 0 : index
    %10 = vector.load %arg2[%c0_6, %c0_7] : memref<32x64xbf16, #tpu.memory_space<vmem>>, vector<32x64xbf16>
    %cst_8 = arith.constant dense<0.000000e+00> : vector<32x256xf32>
    %11 = tpu.matmul %10, %9, %cst_8 {dimension_numbers = #tpu.dot_dimension_numbers<[1], [0], [0], [1], [0, 0, 1, 1], [], []>} : vector<32x64xbf16>, vector<64x256xbf16>, vector<32x256xf32> -> vector<32x256xf32>
    %cst_9 = arith.constant dense<0xFF800000> : vector<256xf32>
    %12 = vector.multi_reduction <maximumf>, %11, %cst_9 [0] : vector<32x256xf32> to vector<256xf32>
    %13 = vector.shape_cast %12 : vector<256xf32> to vector<1x256xf32>
    %14 = vector.broadcast %13 : vector<1x256xf32> to vector<32x256xf32>
    %15 = arith.subf %11, %14 : vector<32x256xf32>
    %16 = arith.truncf %15 : vector<32x256xf32> to vector<32x256xbf16>
    %17 = math.exp %16 : vector<32x256xbf16>
    %18 = arith.extf %17 : vector<32x256xbf16> to vector<32x256xf32>
    %cst_10 = arith.constant dense<0.000000e+00> : vector<256xf32>
    %19 = vector.multi_reduction <add>, %18, %cst_10 [0] : vector<32x256xf32> to vector<256xf32>
    %20 = vector.shape_cast %19 : vector<256xf32> to vector<1x256xf32>
    %21 = tpu.reciprocal %20 {approx = true} : vector<1x256xf32> -> vector<1x256xf32>
    %22 = arith.truncf %21 : vector<1x256xf32> to vector<1x256xbf16>
    %23 = vector.broadcast %22 : vector<1x256xbf16> to vector<32x256xbf16>
    %24 = arith.mulf %17, %23 : vector<32x256xbf16>
    %cst_11 = arith.constant dense<0.000000e+00> : vector<32x65xf32>
    %25 = tpu.matmul %24, %8, %cst_11 {dimension_numbers = #tpu.dot_dimension_numbers<[1], [1], [0], [0], [0, 0, 1, 0], [], []>} : vector<32x256xbf16>, vector<65x256xbf16>, vector<32x65xf32> -> vector<32x65xf32>
    %26 = vector.extract_strided_slice %25 {offsets = [0, 64], sizes = [32, 1], strides = [1, 1]} : vector<32x65xf32> to vector<32x1xf32>
    %27 = vector.extract_strided_slice %25 {offsets = [0, 0], sizes = [32, 64], strides = [1, 1]} : vector<32x65xf32> to vector<32x64xf32>
    %cst_12 = arith.constant 9.99999997E-7 : f32
    %28 = vector.broadcast %cst_12 : f32 to vector<32x1xf32>
    %29 = arith.addf %28, %26 : vector<32x1xf32>
    %30 = tpu.reciprocal %29 {approx = true} : vector<32x1xf32> -> vector<32x1xf32>
    %31 = vector.broadcast %30 : vector<32x1xf32> to vector<32x64xf32>
    %32 = arith.mulf %27, %31 : vector<32x64xf32>
    %33 = arith.mulf %32, %32 : vector<32x64xf32>
    %cst_13 = arith.constant dense<0.000000e+00> : vector<32xf32>
    %34 = vector.multi_reduction <add>, %33, %cst_13 [1] : vector<32x64xf32> to vector<32xf32>
    %35 = vector.shape_cast %34 : vector<32xf32> to vector<32x1xf32>
    %cst_14 = arith.constant 9.99999996E-13 : f32
    %36 = vector.broadcast %cst_14 : f32 to vector<32x1xf32>
    %37 = arith.addf %35, %36 : vector<32x1xf32>
    %38 = math.rsqrt %37 : vector<32x1xf32>
    %39 = vector.broadcast %38 : vector<32x1xf32> to vector<32x64xf32>
    %40 = arith.mulf %32, %39 : vector<32x64xf32>
    %41 = arith.truncf %40 : vector<32x64xf32> to vector<32x64xbf16>
    %cst_15 = arith.constant dense<0.000000e+00> : vector<32x256xf32>
    %42 = tpu.matmul %41, %9, %cst_15 {dimension_numbers = #tpu.dot_dimension_numbers<[1], [0], [0], [1], [0, 0, 1, 1], [], []>} : vector<32x64xbf16>, vector<64x256xbf16>, vector<32x256xf32> -> vector<32x256xf32>
    %cst_16 = arith.constant dense<0xFF800000> : vector<256xf32>
    %43 = vector.multi_reduction <maximumf>, %42, %cst_16 [0] : vector<32x256xf32> to vector<256xf32>
    %44 = vector.shape_cast %43 : vector<256xf32> to vector<1x256xf32>
    %45 = vector.broadcast %44 : vector<1x256xf32> to vector<32x256xf32>
    %46 = arith.subf %42, %45 : vector<32x256xf32>
    %47 = arith.truncf %46 : vector<32x256xf32> to vector<32x256xbf16>
    %48 = math.exp %47 : vector<32x256xbf16>
    %49 = arith.extf %48 : vector<32x256xbf16> to vector<32x256xf32>
    %cst_17 = arith.constant dense<0.000000e+00> : vector<256xf32>
    %50 = vector.multi_reduction <add>, %49, %cst_17 [0] : vector<32x256xf32> to vector<256xf32>
    %51 = vector.shape_cast %50 : vector<256xf32> to vector<1x256xf32>
    %52 = tpu.reciprocal %51 {approx = true} : vector<1x256xf32> -> vector<1x256xf32>
    %53 = arith.truncf %52 : vector<1x256xf32> to vector<1x256xbf16>
    %54 = vector.broadcast %53 : vector<1x256xbf16> to vector<32x256xbf16>
    %55 = arith.mulf %48, %54 : vector<32x256xbf16>
    %cst_18 = arith.constant dense<0.000000e+00> : vector<32x65xf32>
    %56 = tpu.matmul %55, %8, %cst_18 {dimension_numbers = #tpu.dot_dimension_numbers<[1], [1], [0], [0], [0, 0, 1, 0], [], []>} : vector<32x256xbf16>, vector<65x256xbf16>, vector<32x65xf32> -> vector<32x65xf32>
    %57 = vector.extract_strided_slice %56 {offsets = [0, 64], sizes = [32, 1], strides = [1, 1]} : vector<32x65xf32> to vector<32x1xf32>
    %58 = vector.extract_strided_slice %56 {offsets = [0, 0], sizes = [32, 64], strides = [1, 1]} : vector<32x65xf32> to vector<32x64xf32>
    %cst_19 = arith.constant 9.99999997E-7 : f32
    %59 = vector.broadcast %cst_19 : f32 to vector<32x1xf32>
    %60 = arith.addf %59, %57 : vector<32x1xf32>
    %61 = tpu.reciprocal %60 {approx = true} : vector<32x1xf32> -> vector<32x1xf32>
    %62 = vector.broadcast %61 : vector<32x1xf32> to vector<32x64xf32>
    %63 = arith.mulf %58, %62 : vector<32x64xf32>
    %64 = arith.mulf %63, %63 : vector<32x64xf32>
    %cst_20 = arith.constant dense<0.000000e+00> : vector<32xf32>
    %65 = vector.multi_reduction <add>, %64, %cst_20 [1] : vector<32x64xf32> to vector<32xf32>
    %66 = vector.shape_cast %65 : vector<32xf32> to vector<32x1xf32>
    %cst_21 = arith.constant 9.99999996E-13 : f32
    %67 = vector.broadcast %cst_21 : f32 to vector<32x1xf32>
    %68 = arith.addf %66, %67 : vector<32x1xf32>
    %69 = math.rsqrt %68 : vector<32x1xf32>
    %70 = vector.broadcast %69 : vector<32x1xf32> to vector<32x64xf32>
    %71 = arith.mulf %63, %70 : vector<32x64xf32>
    %72 = arith.truncf %71 : vector<32x64xf32> to vector<32x64xbf16>
    %cst_22 = arith.constant dense<0.000000e+00> : vector<32x256xf32>
    %73 = tpu.matmul %72, %9, %cst_22 {dimension_numbers = #tpu.dot_dimension_numbers<[1], [0], [0], [1], [0, 0, 1, 1], [], []>} : vector<32x64xbf16>, vector<64x256xbf16>, vector<32x256xf32> -> vector<32x256xf32>
    %cst_23 = arith.constant dense<0xFF800000> : vector<256xf32>
    %74 = vector.multi_reduction <maximumf>, %73, %cst_23 [0] : vector<32x256xf32> to vector<256xf32>
    %75 = vector.shape_cast %74 : vector<256xf32> to vector<1x256xf32>
    %76 = vector.broadcast %75 : vector<1x256xf32> to vector<32x256xf32>
    %77 = arith.subf %73, %76 : vector<32x256xf32>
    %78 = arith.truncf %77 : vector<32x256xf32> to vector<32x256xbf16>
    %79 = math.exp %78 : vector<32x256xbf16>
    %80 = arith.extf %79 : vector<32x256xbf16> to vector<32x256xf32>
    %cst_24 = arith.constant dense<0.000000e+00> : vector<256xf32>
    %81 = vector.multi_reduction <add>, %80, %cst_24 [0] : vector<32x256xf32> to vector<256xf32>
    %82 = vector.shape_cast %81 : vector<256xf32> to vector<1x256xf32>
    %83 = tpu.reciprocal %82 {approx = true} : vector<1x256xf32> -> vector<1x256xf32>
    %84 = arith.truncf %83 : vector<1x256xf32> to vector<1x256xbf16>
    %85 = vector.broadcast %84 : vector<1x256xbf16> to vector<32x256xbf16>
    %86 = arith.mulf %79, %85 : vector<32x256xbf16>
    %cst_25 = arith.constant dense<0.000000e+00> : vector<32x65xf32>
    %87 = tpu.matmul %86, %8, %cst_25 {dimension_numbers = #tpu.dot_dimension_numbers<[1], [1], [0], [0], [0, 0, 1, 0], [], []>} : vector<32x256xbf16>, vector<65x256xbf16>, vector<32x65xf32> -> vector<32x65xf32>
    %88 = vector.extract_strided_slice %87 {offsets = [0, 64], sizes = [32, 1], strides = [1, 1]} : vector<32x65xf32> to vector<32x1xf32>
    %89 = vector.extract_strided_slice %87 {offsets = [0, 0], sizes = [32, 64], strides = [1, 1]} : vector<32x65xf32> to vector<32x64xf32>
    %cst_26 = arith.constant 9.99999997E-7 : f32
    %90 = vector.broadcast %cst_26 : f32 to vector<32x1xf32>
    %91 = arith.addf %90, %88 : vector<32x1xf32>
    %92 = tpu.reciprocal %91 {approx = true} : vector<32x1xf32> -> vector<32x1xf32>
    %93 = vector.broadcast %92 : vector<32x1xf32> to vector<32x64xf32>
    %94 = arith.mulf %89, %93 : vector<32x64xf32>
    %95 = arith.mulf %94, %94 : vector<32x64xf32>
    %cst_27 = arith.constant dense<0.000000e+00> : vector<32xf32>
    %96 = vector.multi_reduction <add>, %95, %cst_27 [1] : vector<32x64xf32> to vector<32xf32>
    %97 = vector.shape_cast %96 : vector<32xf32> to vector<32x1xf32>
    %cst_28 = arith.constant 9.99999996E-13 : f32
    %98 = vector.broadcast %cst_28 : f32 to vector<32x1xf32>
    %99 = arith.addf %97, %98 : vector<32x1xf32>
    %100 = math.rsqrt %99 : vector<32x1xf32>
    %101 = vector.broadcast %100 : vector<32x1xf32> to vector<32x64xf32>
    %102 = arith.mulf %94, %101 : vector<32x64xf32>
    %103 = tpu.transpose %102, [1, 0] : vector<32x64xf32> -> vector<64x32xf32>
    %104 = arith.truncf %103 : vector<64x32xf32> to vector<64x32xbf16>
    %cst_29 = arith.constant dense<0.000000e+00> : vector<64x256xf32>
    %105 = tpu.matmul %104, %86, %cst_29 {dimension_numbers = #tpu.dot_dimension_numbers<[1], [0], [0], [1], [0, 0, 1, 1], [], []>} : vector<64x32xbf16>, vector<32x256xbf16>, vector<64x256xf32> -> vector<64x256xf32>
    %cst_30 = arith.constant 0.000000e+00 : f32
    %106 = vector.broadcast %cst_30 : f32 to vector<64x256xf32>
    %107 = arith.maximumf %105, %106 : vector<64x256xf32>
    %c0_31 = arith.constant 0 : index
    %c0_32 = arith.constant 0 : index
    %108 = vector.load %arg5[%c0_31, %c0_32] : memref<64x64xbf16, #tpu.memory_space<vmem>>, vector<64x64xbf16>
    %109 = arith.truncf %107 : vector<64x256xf32> to vector<64x256xbf16>
    %cst_33 = arith.constant dense<0.000000e+00> : vector<64x256xf32>
    %110 = tpu.matmul %108, %109, %cst_33 {dimension_numbers = #tpu.dot_dimension_numbers<[1], [0], [0], [1], [0, 0, 1, 1], [], []>} : vector<64x64xbf16>, vector<64x256xbf16>, vector<64x256xf32> -> vector<64x256xf32>
    %c0_34 = arith.constant 0 : index
    %c0_35 = arith.constant 0 : index
    %111 = vector.load %arg6[%c0_34, %c0_35] : memref<64x1xf32, #tpu.memory_space<vmem>>, vector<64x1xf32>
    %112 = vector.broadcast %111 : vector<64x1xf32> to vector<64x256xf32>
    %113 = arith.addf %110, %112 : vector<64x256xf32>
    %c0_36 = arith.constant 0 : index
    %c0_37 = arith.constant 0 : index
    %c0_38 = arith.constant 0 : index
    %114 = vector.load %arg1[%c0_36, %c0_37, %c0_38] : memref<1x64x256xf32, #tpu.memory_space<vmem>>, vector<1x64x256xf32>
    %115 = vector.shape_cast %114 : vector<1x64x256xf32> to vector<64x256xf32>
    %116 = arith.addf %113, %115 : vector<64x256xf32>
    %cst_39 = arith.constant 0.000000e+00 : f32
    %117 = vector.broadcast %cst_39 : f32 to vector<64x256xf32>
    %118 = arith.maximumf %116, %117 : vector<64x256xf32>
    %119 = arith.truncf %118 : vector<64x256xf32> to vector<64x256xbf16>
    %c0_40 = arith.constant 0 : index
    %c0_41 = arith.constant 0 : index
    %c0_42 = arith.constant 0 : index
    %120 = vector.load %arg7[%c0_40, %c0_41, %c0_42] : memref<1x64x256xbf16, #tpu.memory_space<vmem>>, vector<1x64x256xbf16>
    %121 = vector.shape_cast %120 : vector<1x64x256xbf16> to vector<64x256xbf16>
    %122 = vector.shape_cast %119 : vector<64x256xbf16> to vector<1x64x256xbf16>
    tpu.vector_store %arg7[%c0_40, %c0_41, %c0_42], %122 {strides = array<i32>} : memref<1x64x256xbf16, #tpu.memory_space<vmem>>, vector<1x64x256xbf16>,
    %c0_43 = arith.constant 0 : index
    %c0_44 = arith.constant 0 : index
    %c0_45 = arith.constant 0 : index
    %123 = vector.load %arg8[%c0_43, %c0_44, %c0_45] : memref<1x64x32xf32, #tpu.memory_space<vmem>>, vector<1x64x32xf32>
    %124 = vector.shape_cast %123 : vector<1x64x32xf32> to vector<64x32xf32>
    %125 = vector.shape_cast %103 : vector<64x32xf32> to vector<1x64x32xf32>
    tpu.vector_store %arg8[%c0_43, %c0_44, %c0_45], %125 {strides = array<i32>} : memref<1x64x32xf32, #tpu.memory_space<vmem>>, vector<1x64x32xf32>,
    return
  }
  func.func @transform_0(%arg0: i32) -> (i32, i32, i32) {
    %c0_i32 = arith.constant 0 : i32
    %c0_i32_0 = arith.constant 0 : i32
    %c0_i32_1 = arith.constant 0 : i32
    return %arg0, %c0_i32, %c0_i32_0 : i32, i32, i32
  }
  func.func @transform_1(%arg0: i32) -> (i32, i32) {
    %c0_i32 = arith.constant 0 : i32
    %c0_i32_0 = arith.constant 0 : i32
    %c0_i32_1 = arith.constant 0 : i32
    return %c0_i32, %c0_i32_0 : i32, i32
  }
  func.func @transform_2(%arg0: i32) -> (i32, i32) {
    %c0_i32 = arith.constant 0 : i32
    %c0_i32_0 = arith.constant 0 : i32
    %c0_i32_1 = arith.constant 0 : i32
    return %c0_i32, %c0_i32_0 : i32, i32
  }
  func.func @transform_3(%arg0: i32) -> (i32, i32) {
    %c0_i32 = arith.constant 0 : i32
    %c0_i32_0 = arith.constant 0 : i32
    %c0_i32_1 = arith.constant 0 : i32
    return %c0_i32, %c0_i32_0 : i32, i32
  }
  func.func @transform_4(%arg0: i32) -> (i32, i32) {
    %c0_i32 = arith.constant 0 : i32
    %c0_i32_0 = arith.constant 0 : i32
    %c0_i32_1 = arith.constant 0 : i32
    return %c0_i32, %c0_i32_0 : i32, i32
  }
  func.func @transform_5(%arg0: i32) -> (i32, i32) {
    %c0_i32 = arith.constant 0 : i32
    %c0_i32_0 = arith.constant 0 : i32
    %c0_i32_1 = arith.constant 0 : i32
    return %c0_i32, %c0_i32_0 : i32, i32
  }
  func.func @transform_6(%arg0: i32) -> (i32, i32, i32) {
    %c0_i32 = arith.constant 0 : i32
    %c0_i32_0 = arith.constant 0 : i32
    %c0_i32_1 = arith.constant 0 : i32
    return %arg0, %c0_i32, %c0_i32_0 : i32, i32, i32
  }
  func.func @transform_7(%arg0: i32) -> (i32, i32, i32) {
    %c0_i32 = arith.constant 0 : i32
    %c0_i32_0 = arith.constant 0 : i32
    %c0_i32_1 = arith.constant 0 : i32
    return %arg0, %c0_i32, %c0_i32_0 : i32, i32, i32
  }
}

</mosaic_0001>

<llo_original>
// kernel: tpu_custom_call.1
$region0: #{tpu_custom_call.1}
  #allocation0 [shape = 'u32[]', space=smem, size = 0x4, offset = 0x4, fixed_abs, tag = 'smem constant byte address 0x4 - core index']
  #allocation1 [shape = 'u32[72,128]{1,0:T(1,128)}', space=vmem, size = 0x9000, scoped, tag = 'internal scratch']
  %s0 = inlined_call_operand.hbm [shape: f32[2,64,256], index: 0, kind: input, shape index: {}]
  %s1 = inlined_call_operand.vmem [shape: bf16[32,64], index: 1, kind: input, shape index: {}]
  %s2 = inlined_call_operand.vmem [shape: bf16[65,64], index: 2, kind: input, shape index: {}]
  %s3 = inlined_call_operand.vmem [shape: f32[65,1], index: 3, kind: input, shape index: {}]
  %s4 = inlined_call_operand.vmem [shape: bf16[64,64], index: 4, kind: input, shape index: {}]
  %s5 = inlined_call_operand.vmem [shape: f32[64,1], index: 5, kind: input, shape index: {}]
  %s6 = inlined_call_operand.hbm [shape: bf16[2,64,256], index: 6, kind: output, shape index: {0}]
  %s7 = inlined_call_operand.vmem [shape: f32[2,64,32], index: 7, kind: output, shape index: {1}]
  %8 = xla_tuple %s6, %s7
  %s9 = sld [smem:[#allocation0]]
  $region69: #{tpu_custom_call.1} parent=0
    _
  %s11 = ssub.s32 1, %s9
  %s12 = scalar_select 0, %s11, %s9
  $region1: #{tpu_custom_call.1} parent=0
    #allocation2 [shape = 'u8[131072]{0}', space=vmem, size = 0x20000, scoped, tag = 'input window, operand 0']
    #allocation3 [shape = 's32[2]{0}', space=sflag, size = 0x8, scoped, tag = 'scoped memory for tpu_custom_call.1']
    #allocation4 [shape = 's32[2]{0}', space=sflag, size = 0x8, scoped, tag = 'scoped memory for tpu_custom_call.1']
    #allocation5 [shape = 'u8[65536]{0}', space=vmem, size = 0x10000, scoped, tag = 'output window, operand 0']
    %13 = vsyncpa [#allocation3], 0
    %s14 = scalar_lea.sflag [#allocation3], 1
    %15 = vsyncpa %s14, 0
    %16 = vsyncpa [#allocation4], 0
    %s17 = scalar_lea.sflag [#allocation4], 1
    %18 = vsyncpa %s17, 0
    loop: start=0, step=1, limit=4
    $region2: #{tpu_custom_call.1} parent=1 // loop_pre_header
      _
    $region3: #{tpu_custom_call.1} parent=1 // loop_header
      %s20 = sphi 0, %s24
      %p21 = scmp.ge.s32.totalorder %s20, 4
      %s30 = sphi 0, %s32
      %s33 = sphi 0, %s30
      %s34 = sphi 0, %s33
      %s50 = sphi 0, %s34
      %s54 = sphi 0, %s54
      %s56 = sphi 0, %s54
      %s57 = sphi 0, %s56
      %s71 = sphi 0, %s57
      %s75 = sphi 0, %s75
      %s77 = sphi 0, %s75
      %s78 = sphi 0, %s77
      %s92 = sphi 0, %s78
      %s96 = sphi 0, %s96
      %s98 = sphi 0, %s96
      %s99 = sphi 0, %s98
      %s113 = sphi 0, %s99
      %s117 = sphi 0, %s117
      %s119 = sphi 0, %s117
      %s120 = sphi 0, %s119
      %s134 = sphi 0, %s120
      %s138 = sphi 0, %s138
      %s140 = sphi 0, %s138
      %s141 = sphi 0, %s140
      %s155 = sphi 0, %s141
      %s161 = sphi 0, %s163
      %s164 = sphi 0, %s161
      %s165 = sphi 0, %s164
      %s181 = sphi 0, %s165
      %s187 = sphi 0, %s189
      %s190 = sphi 0, %s187
      %s191 = sphi 0, %s190
      %s207 = sphi 0, %s191
    $region4: #{tpu_custom_call.1} parent=1 // loop_header_branch
      %23 = sbr.rel (%p21) target = $region8
    $region5: #{tpu_custom_call.1} parent=1 // loop_body
      %s25 = ssub.s32 %s20, 1
      %s26 = ssub.s32 %s20, 2
      %s27 = sadd.s32 %s20, 1
      %s28 = ssub.s32 %s20, %s27
      %p29 = scmp.eq.s32.totalorder %s28, 0
      %s31 = sadd.s32 %s30, 1
      %s32 = scalar_select %p29, %s30, %s31
      %p35 = pneg %p29
      %p36 = scmp.eq.s32.totalorder %s20, 1
      %p37 = por %p35, %p36
      %p38 = scmp.ne.s32.totalorder %s30, %s33
      %p39 = scmp.eq.s32.totalorder %s20, 0
      %p40 = por %p38, %p39
      %p41 = scmp.ne.s32.totalorder %s30, %s33
      %p42 = scmp.eq.s32.totalorder %s25, 1
      %p43 = por %p41, %p42
      %p44 = scmp.ne.s32.totalorder %s33, %s34
      %p45 = scmp.eq.s32.totalorder %s25, 0
      %p46 = por %p44, %p45
      %p47 = scmp.ne.s32.totalorder %s33, %s34
      %p48 = scmp.eq.s32.totalorder %s26, 1
      %p49 = por %p47, %p48
      %p51 = scmp.ne.s32.totalorder %s34, %s50
      %p52 = scmp.eq.s32.totalorder %s26, 0
      %p53 = por %p51, %p52
      %s55 = sadd.s32 %s54, 1
      %p58 = scmp.eq.s32.totalorder %s20, 1
      %p59 = scmp.ne.s32.totalorder %s54, %s56
      %p60 = scmp.eq.s32.totalorder %s20, 0
      %p61 = por %p59, %p60
      %p62 = scmp.ne.s32.totalorder %s54, %s56
      %p63 = scmp.eq.s32.totalorder %s25, 1
      %p64 = por %p62, %p63
      %p65 = scmp.ne.s32.totalorder %s56, %s57
      %p66 = scmp.eq.s32.totalorder %s25, 0
      %p67 = por %p65, %p66
      %p68 = scmp.ne.s32.totalorder %s56, %s57
      %p69 = scmp.eq.s32.totalorder %s26, 1
      %p70 = por %p68, %p69
      %p72 = scmp.ne.s32.totalorder %s57, %s71
      %p73 = scmp.eq.s32.totalorder %s26, 0
      %p74 = por %p72, %p73
      %s76 = sadd.s32 %s75, 1
      %p79 = scmp.eq.s32.totalorder %s20, 1
      %p80 = scmp.ne.s32.totalorder %s75, %s77
      %p81 = scmp.eq.s32.totalorder %s20, 0
      %p82 = por %p80, %p81
      %p83 = scmp.ne.s32.totalorder %s75, %s77
      %p84 = scmp.eq.s32.totalorder %s25, 1
      %p85 = por %p83, %p84
      %p86 = scmp.ne.s32.totalorder %s77, %s78
      %p87 = scmp.eq.s32.totalorder %s25, 0
      %p88 = por %p86, %p87
      %p89 = scmp.ne.s32.totalorder %s77, %s78
      %p90 = scmp.eq.s32.totalorder %s26, 1
      %p91 = por %p89, %p90
      %p93 = scmp.ne.s32.totalorder %s78, %s92
      %p94 = scmp.eq.s32.totalorder %s26, 0
      %p95 = por %p93, %p94
      %s97 = sadd.s32 %s96, 1
      %p100 = scmp.eq.s32.totalorder %s20, 1
      %p101 = scmp.ne.s32.totalorder %s96, %s98
      %p102 = scmp.eq.s32.totalorder %s20, 0
      %p103 = por %p101, %p102
      %p104 = scmp.ne.s32.totalorder %s96, %s98
      %p105 = scmp.eq.s32.totalorder %s25, 1
      %p106 = por %p104, %p105
      %p107 = scmp.ne.s32.totalorder %s98, %s99
      %p108 = scmp.eq.s32.totalorder %s25, 0
      %p109 = por %p107, %p108
      %p110 = scmp.ne.s32.totalorder %s98, %s99
      %p111 = scmp.eq.s32.totalorder %s26, 1
      %p112 = por %p110, %p111
      %p114 = scmp.ne.s32.totalorder %s99, %s113
      %p115 = scmp.eq.s32.totalorder %s26, 0
      %p116 = por %p114, %p115
      %s118 = sadd.s32 %s117, 1
      %p121 = scmp.eq.s32.totalorder %s20, 1
      %p122 = scmp.ne.s32.totalorder %s117, %s119
      %p123 = scmp.eq.s32.totalorder %s20, 0
      %p124 = por %p122, %p123
      %p125 = scmp.ne.s32.totalorder %s117, %s119
      %p126 = scmp.eq.s32.totalorder %s25, 1
      %p127 = por %p125, %p126
      %p128 = scmp.ne.s32.totalorder %s119, %s120
      %p129 = scmp.eq.s32.totalorder %s25, 0
      %p130 = por %p128, %p129
      %p131 = scmp.ne.s32.totalorder %s119, %s120
      %p132 = scmp.eq.s32.totalorder %s26, 1
      %p133 = por %p131, %p132
      %p135 = scmp.ne.s32.totalorder %s120, %s134
      %p136 = scmp.eq.s32.totalorder %s26, 0
      %p137 = por %p135, %p136
      %s139 = sadd.s32 %s138, 1
      %p142 = scmp.eq.s32.totalorder %s20, 1
      %p143 = scmp.ne.s32.totalorder %s138, %s140
      %p144 = scmp.eq.s32.totalorder %s20, 0
      %p145 = por %p143, %p144
      %p146 = scmp.ne.s32.totalorder %s138, %s140
      %p147 = scmp.eq.s32.totalorder %s25, 1
      %p148 = por %p146, %p147
      %p149 = scmp.ne.s32.totalorder %s140, %s141
      %p150 = scmp.eq.s32.totalorder %s25, 0
      %p151 = por %p149, %p150
      %p152 = scmp.ne.s32.totalorder %s140, %s141
      %p153 = scmp.eq.s32.totalorder %s26, 1
      %p154 = por %p152, %p153
      %p156 = scmp.ne.s32.totalorder %s141, %s155
      %p157 = scmp.eq.s32.totalorder %s26, 0
      %p158 = por %p156, %p157
      %s159 = ssub.s32 %s20, %s27
      %p160 = scmp.eq.s32.totalorder %s159, 0
      %s162 = sadd.s32 %s161, 1
      %s163 = scalar_select %p160, %s161, %s162
      %p166 = pneg %p160
      %p167 = scmp.eq.s32.totalorder %s20, 1
      %p168 = por %p166, %p167
      %p169 = scmp.ne.s32.totalorder %s161, %s164
      %p170 = scmp.eq.s32.totalorder %s20, 0
      %p171 = por %p169, %p170
      %p172 = scmp.ne.s32.totalorder %s161, %s164
      %p173 = scmp.eq.s32.totalorder %s25, 1
      %p174 = por %p172, %p173
      %p175 = scmp.ne.s32.totalorder %s164, %s165
      %p176 = scmp.eq.s32.totalorder %s25, 0
      %p177 = por %p175, %p176
      %p178 = scmp.ne.s32.totalorder %s164, %s165
      %p179 = scmp.eq.s32.totalorder %s26, 1
      %p180 = por %p178, %p179
      %p182 = scmp.ne.s32.totalorder %s165, %s181
      %p183 = scmp.eq.s32.totalorder %s26, 0
      %p184 = por %p182, %p183
      %s185 = ssub.s32 %s20, %s27
      %p186 = scmp.eq.s32.totalorder %s185, 0
      %s188 = sadd.s32 %s187, 1
      %s189 = scalar_select %p186, %s187, %s188
      %p192 = pneg %p186
      %p193 = scmp.eq.s32.totalorder %s20, 1
      %p194 = por %p192, %p193
      %p195 = scmp.ne.s32.totalorder %s187, %s190
      %p196 = scmp.eq.s32.totalorder %s20, 0
      %p197 = por %p195, %p196
      %p198 = scmp.ne.s32.totalorder %s187, %s190
      %p199 = scmp.eq.s32.totalorder %s25, 1
      %p200 = por %p198, %p199
      %p201 = scmp.ne.s32.totalorder %s190, %s191
      %p202 = scmp.eq.s32.totalorder %s25, 0
      %p203 = por %p201, %p202
      %p204 = scmp.ne.s32.totalorder %s190, %s191
      %p205 = scmp.eq.s32.totalorder %s26, 1
      %p206 = por %p204, %p205
      %p208 = scmp.ne.s32.totalorder %s191, %s207
      %p209 = scmp.eq.s32.totalorder %s26, 0
      %p210 = por %p208, %p209
      %p211 = scmp.le.s32.totalorder 1, %s20
      %p212 = scmp.lt.s32.totalorder %s20, 3
      %p213 = pnand %p211, %p212
      %p214 = pneg %p213
      // Predicated region
      $region9: #{tpu_custom_call.1} parent=5 // pred_check
        _
      $region10: #{tpu_custom_call.1} parent=5 // pred_check_branch
        %216 = sbr.rel (%p213) target = $region12
      $region11: #{tpu_custom_call.1} parent=5 // pred_region
        %s217 = ssub.s32 %s20, 1
        // Predicated region
        $region13: #{tpu_custom_call.1} parent=11 // pred_check
          %p218 = pneg %p67
        $region14: #{tpu_custom_call.1} parent=11 // pred_check_branch
          %220 = sbr.rel (%p218) target = $region16
        $region15: #{tpu_custom_call.1} parent=11 // pred_region
          _
        $region16: #{tpu_custom_call.1} parent=11 // pred_fallthru
          _
        // Predicated region
        $region17: #{tpu_custom_call.1} parent=11 // pred_check
          %p221 = pneg %p88
        $region18: #{tpu_custom_call.1} parent=11 // pred_check_branch
          %223 = sbr.rel (%p221) target = $region20
        $region19: #{tpu_custom_call.1} parent=11 // pred_region
          _
        $region20: #{tpu_custom_call.1} parent=11 // pred_fallthru
          _
        // Predicated region
        $region21: #{tpu_custom_call.1} parent=11 // pred_check
          %p224 = pneg %p109
        $region22: #{tpu_custom_call.1} parent=11 // pred_check_branch
          %226 = sbr.rel (%p224) target = $region24
        $region23: #{tpu_custom_call.1} parent=11 // pred_region
          _
        $region24: #{tpu_custom_call.1} parent=11 // pred_fallthru
          _
        // Predicated region
        $region25: #{tpu_custom_call.1} parent=11 // pred_check
          %p227 = pneg %p130
        $region26: #{tpu_custom_call.1} parent=11 // pred_check_branch
          %229 = sbr.rel (%p227) target = $region28
        $region27: #{tpu_custom_call.1} parent=11 // pred_region
          _
        $region28: #{tpu_custom_call.1} parent=11 // pred_fallthru
          _
        // Predicated region
        $region29: #{tpu_custom_call.1} parent=11 // pred_check
          %p230 = pneg %p151
        $region30: #{tpu_custom_call.1} parent=11 // pred_check_branch
          %232 = sbr.rel (%p230) target = $region32
        $region31: #{tpu_custom_call.1} parent=11 // pred_region
          _
        $region32: #{tpu_custom_call.1} parent=11 // pred_fallthru
          _
      $region12: #{tpu_custom_call.1} parent=5 // pred_fallthru
        _
      %p233 = scmp.lt.s32.totalorder %s20, 2
      // Predicated region
      $region33: #{tpu_custom_call.1} parent=5 // pred_check
        %p234 = pneg %p233
      $region34: #{tpu_custom_call.1} parent=5 // pred_check_branch
        %236 = sbr.rel (%p234) target = $region36
      $region35: #{tpu_custom_call.1} parent=5 // pred_region
        // Predicated region
        $region37: #{tpu_custom_call.1} parent=35 // pred_check
          %p237 = pneg %p40
        $region38: #{tpu_custom_call.1} parent=35 // pred_check_branch
          %239 = sbr.rel (%p237) target = $region40
        $region39: #{tpu_custom_call.1} parent=35 // pred_region
          %s240 = sand.u32 %s30, 1
          %s241 = scalar_lea.sflag [#allocation3], %s240
          %s242 = sand.u32 %s30, 1
          %s243 = smul.addr %s242, 128
          %s244 = scalar_lea.vmem [#allocation2], %s243
          %246 = vsyncadd %s241, 0
          %s247 = smul.addr %s20, 16
          %s248 = smul.addr %s247, 8
          %s249 = scalar_lea.hbm %s0, %s248
          %s250 = sshll.u32 %s249, 4
          %s251 = int_to_ptr.hbm [resolvable:$true] %s250
          %s252 = sshll.u32 %s244, 4
          %s253 = int_to_ptr.vmem [resolvable:$true] %s252
          %258 = dma.hbm_to_vmem [thread:$0]  %s251, 2048, %s253, %s241, 256, 256, 16
        $region40: #{tpu_custom_call.1} parent=35 // pred_fallthru
          _
      $region36: #{tpu_custom_call.1} parent=5 // pred_fallthru
        _
      %p259 = scmp.le.s32.totalorder 1, %s20
      %p260 = scmp.lt.s32.totalorder %s20, 3
      %p261 = pnand %p259, %p260
      %p262 = pneg %p261
      // Predicated region
      $region41: #{tpu_custom_call.1} parent=5 // pred_check
        _
      $region42: #{tpu_custom_call.1} parent=5 // pred_check_branch
        %264 = sbr.rel (%p261) target = $region44
      $region43: #{tpu_custom_call.1} parent=5 // pred_region
        %s265 = ssub.s32 %s20, 1
        %s266 = sand.u32 %s33, 1
        %s267 = scalar_lea.sflag [#allocation3], %s266
        %s268 = sand.u32 %s33, 1
        %s269 = smul.addr %s268, 128
        %s270 = scalar_lea.vmem [#allocation2], %s269
        // Predicated region
        $region45: #{tpu_custom_call.1} parent=43 // pred_check
          %p271 = pneg %p46
        $region46: #{tpu_custom_call.1} parent=43 // pred_check_branch
          %273 = sbr.rel (%p271) target = $region48
        $region47: #{tpu_custom_call.1} parent=43 // pred_region
          %275 = dma.done %s267, 2048
        $region48: #{tpu_custom_call.1} parent=43 // pred_fallthru
          _
        %s276 = sand.u32 %s33, 1
        %s277 = scalar_lea.sflag [#allocation3], %s276
        %s278 = sand.u32 %s33, 1
        %s279 = smul.addr %s278, 128
        %s280 = scalar_lea.vmem [#allocation2], %s279
        %p281 = pneg %p46
        %p282 = pneg %p43
        %p283 = pneg %p67
        %p284 = pneg %p64
        %p285 = pneg %p88
        %p286 = pneg %p85
        %p287 = pneg %p109
        %p288 = pneg %p106
        %p289 = pneg %p130
        %p290 = pneg %p127
        %p291 = pneg %p151
        %p292 = pneg %p148
        %p293 = pneg %p177
        %p294 = pneg %p174
        %s295 = sand.u32 %s164, 1
        %s296 = scalar_lea.sflag [#allocation4], %s295
        %s297 = sand.u32 %s164, 1
        %s298 = smul.addr %s297, 64
        %s299 = scalar_lea.vmem [#allocation5], %s298
        %p300 = pneg %p203
        %p301 = pneg %p200
        %p302 = scmp.lt.s32.totalorder %s25, 1
        %s303 = scalar_select %p302, %s25, 1
        %s304 = smul.addr %s303, 8
        %s305 = smul.addr %s304, 8
        %s306 = scalar_lea.vmem %s7, %s305
        %p307 = scmp.lt.s32.totalorder %s25, 1
        %s308 = scalar_select %p307, %s25, 1
        %s309 = smul.addr %s308, 8
        %s310 = smul.addr %s309, 8
        %s311 = scalar_lea.vmem %s7, %s310
        %v313 = vld [vmem:[%s2] sm:$0xf]
        %v314 = vld [vmem:[%s2 + $0x4] sm:$0xf]
        %v315 = vld [vmem:[%s2 + $0x8] sm:$0xf]
        %v316 = vld [vmem:[%s2 + $0xc] sm:$0xf]
        %v317 = vld [vmem:[%s2 + $0x10] sm:$0xf]
        %v318 = vld [vmem:[%s2 + $0x14] sm:$0xf]
        %v319 = vld [vmem:[%s2 + $0x18] sm:$0xf]
        %v320 = vld [vmem:[%s2 + $0x1c] sm:$0xf]
        %v321 = vld [vmem:[%s2 + $0x20] sm:$0x1]
        %v322 = vld [vmem:[%s270] sm:$0xff]
        %v323 = vld [vmem:[%s270 + $0x8] sm:$0xff]
        %v324 = vld [vmem:[%s270 + $0x10] sm:$0xff]
        %v325 = vld [vmem:[%s270 + $0x18] sm:$0xff]
        %v326 = vld [vmem:[%s270 + $0x20] sm:$0xff]
        %v327 = vld [vmem:[%s270 + $0x28] sm:$0xff]
        %v328 = vld [vmem:[%s270 + $0x30] sm:$0xff]
        %v329 = vld [vmem:[%s270 + $0x38] sm:$0xff]
        %v330 = vld [vmem:[%s270 + $0x40] sm:$0xff]
        %v331 = vld [vmem:[%s270 + $0x48] sm:$0xff]
        %v332 = vld [vmem:[%s270 + $0x50] sm:$0xff]
        %v333 = vld [vmem:[%s270 + $0x58] sm:$0xff]
        %v334 = vld [vmem:[%s270 + $0x60] sm:$0xff]
        %v335 = vld [vmem:[%s270 + $0x68] sm:$0xff]
        %v336 = vld [vmem:[%s270 + $0x70] sm:$0xff]
        %v337 = vld [vmem:[%s270 + $0x78] sm:$0xff]
        %v338 = vpack.c.bf16 %v324, %v322
        %v339 = vpack.c.bf16 %v325, %v323
        %v340 = vpack.c.bf16 %v328, %v326
        %v341 = vpack.c.bf16 %v329, %v327
        %v342 = vpack.c.bf16 %v332, %v330
        %v343 = vpack.c.bf16 %v333, %v331
        %v344 = vpack.c.bf16 %v336, %v334
        %v345 = vpack.c.bf16 %v337, %v335
        %v346 = vld [vmem:[%s3] sm:$0xff]
        %v347 = vld [vmem:[%s3 + $0x8] sm:$0xff]
        %v348 = vld [vmem:[%s3 + $0x10] sm:$0xff]
        %v349 = vld [vmem:[%s3 + $0x18] sm:$0xff]
        %v350 = vld [vmem:[%s3 + $0x20] sm:$0xff]
        %v351 = vld [vmem:[%s3 + $0x28] sm:$0xff]
        %v352 = vld [vmem:[%s3 + $0x30] sm:$0xff]
        %v353 = vld [vmem:[%s3 + $0x38] sm:$0xff]
        %v354 = vld [vmem:[%s3 + $0x40] sm:$0x1]
        %356 = vset.pattern.permute.xlu0 0
        %357 = vperm.xlu0 %356, %v346
        %v358 = vpop.permute.xlu0 %357
        %361 = vset.pattern.permute.xlu0 0
        %362 = vperm.xlu0 %361, %v347
        %v363 = vpop.permute.xlu0 %362
        %366 = vset.pattern.permute.xlu0 0
        %367 = vperm.xlu0 %366, %v348
        %v368 = vpop.permute.xlu0 %367
        %371 = vset.pattern.permute.xlu0 0
        %372 = vperm.xlu0 %371, %v349
        %v373 = vpop.permute.xlu0 %372
        %376 = vset.pattern.permute.xlu0 0
        %377 = vperm.xlu0 %376, %v350
        %v378 = vpop.permute.xlu0 %377
        %381 = vset.pattern.permute.xlu0 0
        %382 = vperm.xlu0 %381, %v351
        %v383 = vpop.permute.xlu0 %382
        %386 = vset.pattern.permute.xlu0 0
        %387 = vperm.xlu0 %386, %v352
        %v388 = vpop.permute.xlu0 %387
        %391 = vset.pattern.permute.xlu0 0
        %392 = vperm.xlu0 %391, %v353
        %v393 = vpop.permute.xlu0 %392
        %396 = vset.pattern.permute.xlu0 0
        %397 = vperm.xlu0 %396, %v354
        %v398 = vpop.permute.xlu0 %397
        %v409 = vunpack.c.l.b16 %v313
        %v410 = vunpack.c.l.b16 %v314
        %v411 = vunpack.c.l.b16 %v315
        %v412 = vunpack.c.l.b16 %v316
        %v413 = vunpack.c.l.b16 %v317
        %v414 = vunpack.c.l.b16 %v318
        %v415 = vunpack.c.l.b16 %v319
        %v416 = vunpack.c.l.b16 %v320
        %v417 = vunpack.c.l.b16 %v321
        %v418 = vpack.c.b16 %v410, %v409
        %v419 = vpack.c.b16 %v412, %v411
        %v420 = vpack.c.b16 %v414, %v413
        %v421 = vpack.c.b16 %v416, %v415
        %v422 = vpack.c.b16 %v417, %v417
        %vm423 = vcmask 523264
        %v425 = vsel %vm423, %v418, 0
        %v428 = vsel %vm423, %v419, 0
        %v431 = vsel %vm423, %v420, 0
        %v434 = vsel %vm423, %v421, 0
        %v437 = vsel %vm423, %v422, 0
        %439 = vmatpush.bf16.msra.mxu0 0
        %440 = vmatpush.bf16.msra.mxu0 0
        %441 = vmatpush.bf16.msra.mxu0 0
        %442 = vmatpush.bf16.msra.mxu0 0
        %443 = vmatpush.bf16.msra.mxu0 %v344
        %444 = vmatpush.bf16.msra.mxu0 %v342
        %445 = vmatpush.bf16.msra.mxu0 %v340
        %446 = vmatpush.bf16.msra.mxu0 %v338
        %447 = vmatmul.bf16.gmra.mxu0 %v425
        %v448 = vpop.f32.mrf.mxu0
        %v449 = vadd.f32 %v358, %v448
        %v450 = vpop.f32.mrf.mxu0
        %v451 = vadd.f32 %v363, %v450
        %452 = vmatmul.bf16.gmra.mxu0 %v428
        %v453 = vpop.f32.mrf.mxu0
        %v454 = vadd.f32 %v368, %v453
        %v455 = vpop.f32.mrf.mxu0
        %v456 = vadd.f32 %v373, %v455
        %457 = vmatmul.bf16.gmra.mxu0 %v431
        %v458 = vpop.f32.mrf.mxu0
        %v459 = vadd.f32 %v378, %v458
        %v460 = vpop.f32.mrf.mxu0
        %v461 = vadd.f32 %v383, %v460
        %462 = vmatmul.bf16.gmra.mxu0 %v434
        %v463 = vpop.f32.mrf.mxu0
        %v464 = vadd.f32 %v388, %v463
        %v465 = vpop.f32.mrf.mxu0
        %v466 = vadd.f32 %v393, %v465
        %467 = vmatmul.bf16.gmra.mxu0 %v437
        %v468 = vpop.f32.mrf.mxu0
        %v469 = vadd.f32 %v398, %v468
        %v470 = vpop.f32.mrf.mxu0
        %471 = vdwg.mxu0
        %472 = vmatpush.bf16.msra.mxu0 0
        %473 = vmatpush.bf16.msra.mxu0 0
        %474 = vmatpush.bf16.msra.mxu0 0
        %475 = vmatpush.bf16.msra.mxu0 0
        %476 = vmatpush.bf16.msra.mxu0 %v345
        %477 = vmatpush.bf16.msra.mxu0 %v343
        %478 = vmatpush.bf16.msra.mxu0 %v341
        %479 = vmatpush.bf16.msra.mxu0 %v339
        %480 = vmatmul.bf16.gmra.mxu0 %v425
        %v481 = vpop.f32.mrf.mxu0
        %v482 = vadd.f32 %v358, %v481
        %v483 = vpop.f32.mrf.mxu0
        %v484 = vadd.f32 %v363, %v483
        %485 = vmatmul.bf16.gmra.mxu0 %v428
        %v486 = vpop.f32.mrf.mxu0
        %v487 = vadd.f32 %v368, %v486
        %v488 = vpop.f32.mrf.mxu0
        %v489 = vadd.f32 %v373, %v488
        %490 = vmatmul.bf16.gmra.mxu0 %v431
        %v491 = vpop.f32.mrf.mxu0
        %v492 = vadd.f32 %v378, %v491
        %v493 = vpop.f32.mrf.mxu0
        %v494 = vadd.f32 %v383, %v493
        %495 = vmatmul.bf16.gmra.mxu0 %v434
        %v496 = vpop.f32.mrf.mxu0
        %v497 = vadd.f32 %v388, %v496
        %v498 = vpop.f32.mrf.mxu0
        %v499 = vadd.f32 %v393, %v498
        %500 = vmatmul.bf16.gmra.mxu0 %v437
        %v501 = vpop.f32.mrf.mxu0
        %v502 = vadd.f32 %v398, %v501
        %v503 = vpop.f32.mrf.mxu0
        %504 = vdwg.mxu0
        %v505 = vpack.c.bf16 %v482, %v449
        %v506 = vpack.c.bf16 %v484, %v451
        %v507 = vpack.c.bf16 %v487, %v454
        %v508 = vpack.c.bf16 %v489, %v456
        %v509 = vpack.c.bf16 %v492, %v459
        %v510 = vpack.c.bf16 %v494, %v461
        %v511 = vpack.c.bf16 %v497, %v464
        %v512 = vpack.c.bf16 %v499, %v466
        %v513 = vpack.c.bf16 %v502, %v469
        %v514 = vld [vmem:[%s1] sm:$0xf]
        %v515 = vld [vmem:[%s1 + $0x4] sm:$0xf]
        %v516 = vld [vmem:[%s1 + $0x8] sm:$0xf]
        %v517 = vld [vmem:[%s1 + $0xc] sm:$0xf]
        %v522 = vunpack.c.l.b16 %v514
        %v523 = vunpack.c.l.b16 %v515
        %v524 = vunpack.c.l.b16 %v516
        %v525 = vunpack.c.l.b16 %v517
        %v526 = vpack.c.b16 %v523, %v522
        %v527 = vpack.c.b16 %v525, %v524
        %v536 = vunpack.c.l.b16 %v505
        %v537 = vunpack.c.h.b16 %v505
        %v538 = vunpack.c.l.b16 %v506
        %v539 = vunpack.c.h.b16 %v506
        %v540 = vunpack.c.l.b16 %v507
        %v541 = vunpack.c.h.b16 %v507
        %v542 = vunpack.c.l.b16 %v508
        %v543 = vunpack.c.h.b16 %v508
        %v544 = vunpack.c.l.b16 %v509
        %v545 = vunpack.c.h.b16 %v509
        %v546 = vunpack.c.l.b16 %v510
        %v547 = vunpack.c.h.b16 %v510
        %v548 = vunpack.c.l.b16 %v511
        %v549 = vunpack.c.h.b16 %v511
        %v550 = vunpack.c.l.b16 %v512
        %v551 = vunpack.c.h.b16 %v512
        %v552 = vpack.c.b16 %v538, %v536
        %v553 = vpack.c.b16 %v539, %v537
        %v554 = vpack.c.b16 %v542, %v540
        %v555 = vpack.c.b16 %v543, %v541
        %v556 = vpack.c.b16 %v546, %v544
        %v557 = vpack.c.b16 %v547, %v545
        %v558 = vpack.c.b16 %v550, %v548
        %v559 = vpack.c.b16 %v551, %v549
        %v569 = vsel %vm423, %v526, 0
        %v572 = vsel %vm423, %v527, 0
        %574 = vmatpush.bf16.msra.mxu0 0
        %575 = vmatpush.bf16.msra.mxu0 0
        %576 = vmatpush.bf16.msra.mxu0 0
        %577 = vmatpush.bf16.msra.mxu0 0
        %578 = vmatpush.bf16.msra.mxu0 %v558
        %579 = vmatpush.bf16.msra.mxu0 %v556
        %580 = vmatpush.bf16.msra.mxu0 %v554
        %581 = vmatpush.bf16.msra.mxu0 %v552
        %582 = vmatmul.bf16.gmra.mxu0 %v569
        %v583 = vpop.f32.mrf.mxu0
        %v584 = vadd.f32 0.0, %v583
        %v585 = vpop.f32.mrf.mxu0
        %v586 = vadd.f32 0.0, %v585
        %587 = vmatmul.bf16.gmra.mxu0 %v572
        %v588 = vpop.f32.mrf.mxu0
        %v589 = vadd.f32 0.0, %v588
        %v590 = vpop.f32.mrf.mxu0
        %v591 = vadd.f32 0.0, %v590
        %592 = vdwg.mxu0
        %593 = vmatpush.bf16.msra.mxu0 0
        %594 = vmatpush.bf16.msra.mxu0 0
        %595 = vmatpush.bf16.msra.mxu0 0
        %596 = vmatpush.bf16.msra.mxu0 0
        %597 = vmatpush.bf16.msra.mxu0 %v559
        %598 = vmatpush.bf16.msra.mxu0 %v557
        %599 = vmatpush.bf16.msra.mxu0 %v555
        %600 = vmatpush.bf16.msra.mxu0 %v553
        %601 = vmatmul.bf16.gmra.mxu0 %v569
        %v602 = vpop.f32.mrf.mxu0
        %v603 = vadd.f32 0.0, %v602
        %v604 = vpop.f32.mrf.mxu0
        %v605 = vadd.f32 0.0, %v604
        %606 = vmatmul.bf16.gmra.mxu0 %v572
        %v607 = vpop.f32.mrf.mxu0
        %v608 = vadd.f32 0.0, %v607
        %v609 = vpop.f32.mrf.mxu0
        %v610 = vadd.f32 0.0, %v609
        %611 = vdwg.mxu0
        %v612 = vmax.f32 %v584, %v589
        %v613 = vmax.f32 %v586, %v591
        %v614 = vmax.f32 %v612, %v613
        %v615 = vrot.slane %v614, 4
        %v616 = vmax.f32 %v614, %v615
        %v617 = vrot.slane %v616, 2
        %v618 = vmax.f32 %v616, %v617
        %v619 = vrot.slane %v618, 1
        %v620 = vmax.f32 %v618, %v619
        %v621 = vmax.f32 %v603, %v608
        %v622 = vmax.f32 %v605, %v610
        %v623 = vmax.f32 %v621, %v622
        %v624 = vrot.slane %v623, 4
        %v625 = vmax.f32 %v623, %v624
        %v626 = vrot.slane %v625, 2
        %v627 = vmax.f32 %v625, %v626
        %v628 = vrot.slane %v627, 1
        %v629 = vmax.f32 %v627, %v628
        %v630 = vsub.f32 %v584, %v620
        %v631 = vsub.f32 %v603, %v629
        %v632 = vsub.f32 %v586, %v620
        %v633 = vsub.f32 %v605, %v629
        %v634 = vsub.f32 %v589, %v620
        %v635 = vsub.f32 %v608, %v629
        %v636 = vsub.f32 %v591, %v620
        %v637 = vsub.f32 %v610, %v629
        %v638 = vpack.c.bf16 %v631, %v630
        %v639 = vpack.c.bf16 %v633, %v632
        %v640 = vpack.c.bf16 %v635, %v634
        %v641 = vpack.c.bf16 %v637, %v636
        %v642 = vunpack.c.l.bf16 %v638
        %v643 = vunpack.c.h.bf16 %v638
        %v644 = vunpack.c.l.bf16 %v639
        %v645 = vunpack.c.h.bf16 %v639
        %v646 = vunpack.c.l.bf16 %v640
        %v647 = vunpack.c.h.bf16 %v640
        %v648 = vunpack.c.l.bf16 %v641
        %v649 = vunpack.c.h.bf16 %v641
        %v650 = vmul.f32 %v642, 1.442695
        %v651 = vpow.pop %v650
        %v652 = vmul.f32 %v643, 1.442695
        %v653 = vpow.pop %v652
        %v654 = vmul.f32 %v644, 1.442695
        %v655 = vpow.pop %v654
        %v656 = vmul.f32 %v645, 1.442695
        %v657 = vpow.pop %v656
        %v658 = vmul.f32 %v646, 1.442695
        %v659 = vpow.pop %v658
        %v660 = vmul.f32 %v647, 1.442695
        %v661 = vpow.pop %v660
        %v662 = vmul.f32 %v648, 1.442695
        %v663 = vpow.pop %v662
        %v664 = vmul.f32 %v649, 1.442695
        %v665 = vpow.pop %v664
        %v666 = vpack.c.bf16 %v653, %v651
        %v667 = vpack.c.bf16 %v657, %v655
        %v668 = vpack.c.bf16 %v661, %v659
        %v669 = vpack.c.bf16 %v665, %v663
        %v670 = vunpack.c.l.bf16 %v666
        %v671 = vunpack.c.h.bf16 %v666
        %v672 = vunpack.c.l.bf16 %v667
        %v673 = vunpack.c.h.bf16 %v667
        %v674 = vunpack.c.l.bf16 %v668
        %v675 = vunpack.c.h.bf16 %v668
        %v676 = vunpack.c.l.bf16 %v669
        %v677 = vunpack.c.h.bf16 %v669
        %v678 = vadd.f32 %v670, %v672
        %v679 = vadd.f32 %v678, %v674
        %v680 = vadd.f32 %v679, %v676
        %v681 = vrot.slane %v680, 4
        %v682 = vadd.f32 %v680, %v681
        %v683 = vrot.slane %v682, 2
        %v684 = vadd.f32 %v682, %v683
        %v685 = vrot.slane %v684, 1
        %v686 = vadd.f32 %v684, %v685
        %v687 = vadd.f32 %v671, %v673
        %v688 = vadd.f32 %v687, %v675
        %v689 = vadd.f32 %v688, %v677
        %v690 = vrot.slane %v689, 4
        %v691 = vadd.f32 %v689, %v690
        %v692 = vrot.slane %v691, 2
        %v693 = vadd.f32 %v691, %v692
        %v694 = vrot.slane %v693, 1
        %v695 = vadd.f32 %v693, %v694
        %v696 = vrcp.pop %v686
        %v697 = vrcp.pop %v695
        %v698 = vpack.c.bf16 %v697, %v696
        %v699 = vunpack.c.l.bf16 %v698
        %v700 = vunpack.c.h.bf16 %v698
        %v701 = vmul.f32 %v670, %v699
        %v702 = vmul.f32 %v671, %v700
        %v703 = vmul.f32 %v672, %v699
        %v704 = vmul.f32 %v673, %v700
        %v705 = vmul.f32 %v674, %v699
        %v706 = vmul.f32 %v675, %v700
        %v707 = vmul.f32 %v676, %v699
        %v708 = vmul.f32 %v677, %v700
        %v709 = vpack.c.bf16 %v703, %v701
        %v710 = vpack.c.bf16 %v704, %v702
        %v711 = vpack.c.bf16 %v707, %v705
        %v712 = vpack.c.bf16 %v708, %v706
        %v714 = vunpack.c.l.b16 %v513
        %v715 = vunpack.c.h.b16 %v513
        %v716 = vpack.c.b16 %v714, %v714
        %v717 = vpack.c.b16 %v715, %v715
        %720 = vmatpush.bf16.xpose.msra.mxu0 0
        %721 = vmatpush.bf16.xpose.msra.mxu0 0
        %722 = vmatpush.bf16.xpose.msra.mxu0 0
        %723 = vmatpush.bf16.xpose.msra.mxu0 %v716
        %724 = vmatpush.bf16.xpose.msra.mxu0 %v558
        %725 = vmatpush.bf16.xpose.msra.mxu0 %v556
        %726 = vmatpush.bf16.xpose.msra.mxu0 %v554
        %727 = vmatpush.bf16.xpose.msra.mxu0 %v552
        %728 = vmatmul.bf16.gmra.mxu0 %v709
        %v729 = vpop.f32.mrf.mxu0
        %v730 = vadd.f32 0.0, %v729
        %v731 = vpop.f32.mrf.mxu0
        %v732 = vadd.f32 0.0, %v731
        %733 = vmatmul.bf16.gmra.mxu0 %v711
        %v734 = vpop.f32.mrf.mxu0
        %v735 = vadd.f32 0.0, %v734
        %v736 = vpop.f32.mrf.mxu0
        %v737 = vadd.f32 0.0, %v736
        %738 = vdwg.mxu0
        %739 = vmatpush.bf16.xpose.msra.mxu0 0
        %740 = vmatpush.bf16.xpose.msra.mxu0 0
        %741 = vmatpush.bf16.xpose.msra.mxu0 0
        %742 = vmatpush.bf16.xpose.msra.mxu0 %v717
        %743 = vmatpush.bf16.xpose.msra.mxu0 %v559
        %744 = vmatpush.bf16.xpose.msra.mxu0 %v557
        %745 = vmatpush.bf16.xpose.msra.mxu0 %v555
        %746 = vmatpush.bf16.xpose.msra.mxu0 %v553
        %747 = vmatmul.bf16.gmra.mxu0 %v710
        %v748 = vpop.f32.mrf.mxu0
        %v749 = vadd.f32 %v730, %v748
        %v750 = vpop.f32.mrf.mxu0
        %v751 = vadd.f32 %v732, %v750
        %752 = vmatmul.bf16.gmra.mxu0 %v712
        %v753 = vpop.f32.mrf.mxu0
        %v754 = vadd.f32 %v735, %v753
        %v755 = vpop.f32.mrf.mxu0
        %v756 = vadd.f32 %v737, %v755
        %757 = vdwg.mxu0
        %v758 = vadd.f32 %v749, 1e-06
        %v759 = vadd.f32 %v751, 1e-06
        %v760 = vadd.f32 %v754, 1e-06
        %v761 = vadd.f32 %v756, 1e-06
        %v762 = vrcp.pop %v758
        %v763 = vrcp.pop %v759
        %v764 = vrcp.pop %v760
        %v765 = vrcp.pop %v761
        %767 = vset.pattern.permute.xlu0 64
        %768 = vperm.xlu0 %767, %v762
        %v769 = vpop.permute.xlu0 %768
        %772 = vset.pattern.permute.xlu0 64
        %773 = vperm.xlu0 %772, %v763
        %v774 = vpop.permute.xlu0 %773
        %777 = vset.pattern.permute.xlu0 64
        %778 = vperm.xlu0 %777, %v764
        %v779 = vpop.permute.xlu0 %778
        %782 = vset.pattern.permute.xlu0 64
        %783 = vperm.xlu0 %782, %v765
        %v784 = vpop.permute.xlu0 %783
        %v786 = vmul.f32 %v749, %v769
        %v787 = vmul.f32 %v751, %v774
        %v788 = vmul.f32 %v754, %v779
        %v789 = vmul.f32 %v756, %v784
        %v790 = vmul.f32 %v786, %v786
        %v791 = vmul.f32 %v787, %v787
        %v792 = vmul.f32 %v788, %v788
        %v793 = vmul.f32 %v789, %v789
        %v794 = vsel %vm423, %v790, 0.0
        %795 = vadd.xlane.f32.xlu0 %v794
        %v796 = vpop.xlane.xlu0 %795
        %v797 = vsel %vm423, %v791, 0.0
        %798 = vadd.xlane.f32.xlu0 %v797
        %v799 = vpop.xlane.xlu0 %798
        %v800 = vsel %vm423, %v792, 0.0
        %801 = vadd.xlane.f32.xlu0 %v800
        %v802 = vpop.xlane.xlu0 %801
        %v803 = vsel %vm423, %v793, 0.0
        %804 = vadd.xlane.f32.xlu0 %v803
        %v805 = vpop.xlane.xlu0 %804
        %v806 = vadd.f32 %v796, 1e-12
        %v807 = vadd.f32 %v799, 1e-12
        %v808 = vadd.f32 %v802, 1e-12
        %v809 = vadd.f32 %v805, 1e-12
        %v810 = vrsqrt.pop %v806
        %v811 = vmul.f32 %v810, %v806
        %v812 = vmul.f32 %v811, %v810
        %v813 = vmul.f32 0.5, %v812
        %v814 = vsub.f32 1.5, %v813
        %v815 = vmul.f32 %v810, %v814
        %vm816 = vweird.f32 %v806
        %vm817 = vweird.f32 %v810
        %vm818 = vmor %vm816, %vm817
        %v819 = vsel %vm818, %v810, %v815
        %v820 = vrsqrt.pop %v807
        %v821 = vmul.f32 %v820, %v807
        %v822 = vmul.f32 %v821, %v820
        %v823 = vmul.f32 0.5, %v822
        %v824 = vsub.f32 1.5, %v823
        %v825 = vmul.f32 %v820, %v824
        %vm826 = vweird.f32 %v807
        %vm827 = vweird.f32 %v820
        %vm828 = vmor %vm826, %vm827
        %v829 = vsel %vm828, %v820, %v825
        %v830 = vrsqrt.pop %v808
        %v831 = vmul.f32 %v830, %v808
        %v832 = vmul.f32 %v831, %v830
        %v833 = vmul.f32 0.5, %v832
        %v834 = vsub.f32 1.5, %v833
        %v835 = vmul.f32 %v830, %v834
        %vm836 = vweird.f32 %v808
        %vm837 = vweird.f32 %v830
        %vm838 = vmor %vm836, %vm837
        %v839 = vsel %vm838, %v830, %v835
        %v840 = vrsqrt.pop %v809
        %v841 = vmul.f32 %v840, %v809
        %v842 = vmul.f32 %v841, %v840
        %v843 = vmul.f32 0.5, %v842
        %v844 = vsub.f32 1.5, %v843
        %v845 = vmul.f32 %v840, %v844
        %vm846 = vweird.f32 %v809
        %vm847 = vweird.f32 %v840
        %vm848 = vmor %vm846, %vm847
        %v849 = vsel %vm848, %v840, %v845
        %v850 = vmul.f32 %v786, %v819
        %v851 = vmul.f32 %v787, %v829
        %v852 = vmul.f32 %v788, %v839
        %v853 = vmul.f32 %v789, %v849
        %v854 = vpack.c.bf16 %v851, %v850
        %v855 = vpack.c.bf16 %v853, %v852
        %v857 = vsel %vm423, %v854, 0
        %v860 = vsel %vm423, %v855, 0
        %862 = vmatpush.bf16.msra.mxu0 0
        %863 = vmatpush.bf16.msra.mxu0 0
        %864 = vmatpush.bf16.msra.mxu0 0
        %865 = vmatpush.bf16.msra.mxu0 0
        %866 = vmatpush.bf16.msra.mxu0 %v558
        %867 = vmatpush.bf16.msra.mxu0 %v556
        %868 = vmatpush.bf16.msra.mxu0 %v554
        %869 = vmatpush.bf16.msra.mxu0 %v552
        %870 = vmatmul.bf16.gmra.mxu0 %v857
        %v871 = vpop.f32.mrf.mxu0
        %v872 = vadd.f32 0.0, %v871
        %v873 = vpop.f32.mrf.mxu0
        %v874 = vadd.f32 0.0, %v873
        %875 = vmatmul.bf16.gmra.mxu0 %v860
        %v876 = vpop.f32.mrf.mxu0
        %v877 = vadd.f32 0.0, %v876
        %v878 = vpop.f32.mrf.mxu0
        %v879 = vadd.f32 0.0, %v878
        %880 = vdwg.mxu0
        %881 = vmatpush.bf16.msra.mxu0 0
        %882 = vmatpush.bf16.msra.mxu0 0
        %883 = vmatpush.bf16.msra.mxu0 0
        %884 = vmatpush.bf16.msra.mxu0 0
        %885 = vmatpush.bf16.msra.mxu0 %v559
        %886 = vmatpush.bf16.msra.mxu0 %v557
        %887 = vmatpush.bf16.msra.mxu0 %v555
        %888 = vmatpush.bf16.msra.mxu0 %v553
        %889 = vmatmul.bf16.gmra.mxu0 %v857
        %v890 = vpop.f32.mrf.mxu0
        %v891 = vadd.f32 0.0, %v890
        %v892 = vpop.f32.mrf.mxu0
        %v893 = vadd.f32 0.0, %v892
        %894 = vmatmul.bf16.gmra.mxu0 %v860
        %v895 = vpop.f32.mrf.mxu0
        %v896 = vadd.f32 0.0, %v895
        %v897 = vpop.f32.mrf.mxu0
        %v898 = vadd.f32 0.0, %v897
        %899 = vdwg.mxu0
        %v900 = vmax.f32 %v872, %v877
        %v901 = vmax.f32 %v874, %v879
        %v902 = vmax.f32 %v900, %v901
        %v903 = vrot.slane %v902, 4
        %v904 = vmax.f32 %v902, %v903
        %v905 = vrot.slane %v904, 2
        %v906 = vmax.f32 %v904, %v905
        %v907 = vrot.slane %v906, 1
        %v908 = vmax.f32 %v906, %v907
        %v909 = vmax.f32 %v891, %v896
        %v910 = vmax.f32 %v893, %v898
        %v911 = vmax.f32 %v909, %v910
        %v912 = vrot.slane %v911, 4
        %v913 = vmax.f32 %v911, %v912
        %v914 = vrot.slane %v913, 2
        %v915 = vmax.f32 %v913, %v914
        %v916 = vrot.slane %v915, 1
        %v917 = vmax.f32 %v915, %v916
        %v918 = vsub.f32 %v872, %v908
        %v919 = vsub.f32 %v891, %v917
        %v920 = vsub.f32 %v874, %v908
        %v921 = vsub.f32 %v893, %v917
        %v922 = vsub.f32 %v877, %v908
        %v923 = vsub.f32 %v896, %v917
        %v924 = vsub.f32 %v879, %v908
        %v925 = vsub.f32 %v898, %v917
        %v926 = vpack.c.bf16 %v919, %v918
        %v927 = vpack.c.bf16 %v921, %v920
        %v928 = vpack.c.bf16 %v923, %v922
        %v929 = vpack.c.bf16 %v925, %v924
        %v930 = vunpack.c.l.bf16 %v926
        %v931 = vunpack.c.h.bf16 %v926
        %v932 = vunpack.c.l.bf16 %v927
        %v933 = vunpack.c.h.bf16 %v927
        %v934 = vunpack.c.l.bf16 %v928
        %v935 = vunpack.c.h.bf16 %v928
        %v936 = vunpack.c.l.bf16 %v929
        %v937 = vunpack.c.h.bf16 %v929
        %v938 = vmul.f32 %v930, 1.442695
        %v939 = vpow.pop %v938
        %v940 = vmul.f32 %v931, 1.442695
        %v941 = vpow.pop %v940
        %v942 = vmul.f32 %v932, 1.442695
        %v943 = vpow.pop %v942
        %v944 = vmul.f32 %v933, 1.442695
        %v945 = vpow.pop %v944
        %v946 = vmul.f32 %v934, 1.442695
        %v947 = vpow.pop %v946
        %v948 = vmul.f32 %v935, 1.442695
        %v949 = vpow.pop %v948
        %v950 = vmul.f32 %v936, 1.442695
        %v951 = vpow.pop %v950
        %v952 = vmul.f32 %v937, 1.442695
        %v953 = vpow.pop %v952
        %v954 = vpack.c.bf16 %v941, %v939
        %v955 = vpack.c.bf16 %v945, %v943
        %v956 = vpack.c.bf16 %v949, %v947
        %v957 = vpack.c.bf16 %v953, %v951
        %v958 = vunpack.c.l.bf16 %v954
        %v959 = vunpack.c.h.bf16 %v954
        %v960 = vunpack.c.l.bf16 %v955
        %v961 = vunpack.c.h.bf16 %v955
        %v962 = vunpack.c.l.bf16 %v956
        %v963 = vunpack.c.h.bf16 %v956
        %v964 = vunpack.c.l.bf16 %v957
        %v965 = vunpack.c.h.bf16 %v957
        %v966 = vadd.f32 %v958, %v960
        %v967 = vadd.f32 %v966, %v962
        %v968 = vadd.f32 %v967, %v964
        %v969 = vrot.slane %v968, 4
        %v970 = vadd.f32 %v968, %v969
        %v971 = vrot.slane %v970, 2
        %v972 = vadd.f32 %v970, %v971
        %v973 = vrot.slane %v972, 1
        %v974 = vadd.f32 %v972, %v973
        %v975 = vadd.f32 %v959, %v961
        %v976 = vadd.f32 %v975, %v963
        %v977 = vadd.f32 %v976, %v965
        %v978 = vrot.slane %v977, 4
        %v979 = vadd.f32 %v977, %v978
        %v980 = vrot.slane %v979, 2
        %v981 = vadd.f32 %v979, %v980
        %v982 = vrot.slane %v981, 1
        %v983 = vadd.f32 %v981, %v982
        %v984 = vrcp.pop %v974
        %v985 = vrcp.pop %v983
        %v986 = vpack.c.bf16 %v985, %v984
        %v987 = vunpack.c.l.bf16 %v986
        %v988 = vunpack.c.h.bf16 %v986
        %v989 = vmul.f32 %v958, %v987
        %v990 = vmul.f32 %v959, %v988
        %v991 = vmul.f32 %v960, %v987
        %v992 = vmul.f32 %v961, %v988
        %v993 = vmul.f32 %v962, %v987
        %v994 = vmul.f32 %v963, %v988
        %v995 = vmul.f32 %v964, %v987
        %v996 = vmul.f32 %v965, %v988
        %v997 = vpack.c.bf16 %v991, %v989
        %v998 = vpack.c.bf16 %v992, %v990
        %v999 = vpack.c.bf16 %v995, %v993
        %v1000 = vpack.c.bf16 %v996, %v994
        %1001 = vmatpush.bf16.xpose.msra.mxu0 0
        %1002 = vmatpush.bf16.xpose.msra.mxu0 0
        %1003 = vmatpush.bf16.xpose.msra.mxu0 0
        %1004 = vmatpush.bf16.xpose.msra.mxu0 %v716
        %1005 = vmatpush.bf16.xpose.msra.mxu0 %v558
        %1006 = vmatpush.bf16.xpose.msra.mxu0 %v556
        %1007 = vmatpush.bf16.xpose.msra.mxu0 %v554
        %1008 = vmatpush.bf16.xpose.msra.mxu0 %v552
        %1009 = vmatmul.bf16.gmra.mxu0 %v997
        %v1010 = vpop.f32.mrf.mxu0
        %v1011 = vadd.f32 0.0, %v1010
        %v1012 = vpop.f32.mrf.mxu0
        %v1013 = vadd.f32 0.0, %v1012
        %1014 = vmatmul.bf16.gmra.mxu0 %v999
        %v1015 = vpop.f32.mrf.mxu0
        %v1016 = vadd.f32 0.0, %v1015
        %v1017 = vpop.f32.mrf.mxu0
        %v1018 = vadd.f32 0.0, %v1017
        %1019 = vdwg.mxu0
        %1020 = vmatpush.bf16.xpose.msra.mxu0 0
        %1021 = vmatpush.bf16.xpose.msra.mxu0 0
        %1022 = vmatpush.bf16.xpose.msra.mxu0 0
        %1023 = vmatpush.bf16.xpose.msra.mxu0 %v717
        %1024 = vmatpush.bf16.xpose.msra.mxu0 %v559
        %1025 = vmatpush.bf16.xpose.msra.mxu0 %v557
        %1026 = vmatpush.bf16.xpose.msra.mxu0 %v555
        %1027 = vmatpush.bf16.xpose.msra.mxu0 %v553
        %1028 = vmatmul.bf16.gmra.mxu0 %v998
        %v1029 = vpop.f32.mrf.mxu0
        %v1030 = vadd.f32 %v1011, %v1029
        %v1031 = vpop.f32.mrf.mxu0
        %v1032 = vadd.f32 %v1013, %v1031
        %1033 = vmatmul.bf16.gmra.mxu0 %v1000
        %v1034 = vpop.f32.mrf.mxu0
        %v1035 = vadd.f32 %v1016, %v1034
        %v1036 = vpop.f32.mrf.mxu0
        %v1037 = vadd.f32 %v1018, %v1036
        %1038 = vdwg.mxu0
        %v1039 = vadd.f32 %v1030, 1e-06
        %v1040 = vadd.f32 %v1032, 1e-06
        %v1041 = vadd.f32 %v1035, 1e-06
        %v1042 = vadd.f32 %v1037, 1e-06
        %v1043 = vrcp.pop %v1039
        %v1044 = vrcp.pop %v1040
        %v1045 = vrcp.pop %v1041
        %v1046 = vrcp.pop %v1042
        %1048 = vset.pattern.permute.xlu0 64
        %1049 = vperm.xlu0 %1048, %v1043
        %v1050 = vpop.permute.xlu0 %1049
        %1053 = vset.pattern.permute.xlu0 64
        %1054 = vperm.xlu0 %1053, %v1044
        %v1055 = vpop.permute.xlu0 %1054
        %1058 = vset.pattern.permute.xlu0 64
        %1059 = vperm.xlu0 %1058, %v1045
        %v1060 = vpop.permute.xlu0 %1059
        %1063 = vset.pattern.permute.xlu0 64
        %1064 = vperm.xlu0 %1063, %v1046
        %v1065 = vpop.permute.xlu0 %1064
        %v1067 = vmul.f32 %v1030, %v1050
        %v1068 = vmul.f32 %v1032, %v1055
        %v1069 = vmul.f32 %v1035, %v1060
        %v1070 = vmul.f32 %v1037, %v1065
        %v1071 = vmul.f32 %v1067, %v1067
        %v1072 = vmul.f32 %v1068, %v1068
        %v1073 = vmul.f32 %v1069, %v1069
        %v1074 = vmul.f32 %v1070, %v1070
        %v1075 = vsel %vm423, %v1071, 0.0
        %1076 = vadd.xlane.f32.xlu0 %v1075
        %v1077 = vpop.xlane.xlu0 %1076
        %v1078 = vsel %vm423, %v1072, 0.0
        %1079 = vadd.xlane.f32.xlu0 %v1078
        %v1080 = vpop.xlane.xlu0 %1079
        %v1081 = vsel %vm423, %v1073, 0.0
        %1082 = vadd.xlane.f32.xlu0 %v1081
        %v1083 = vpop.xlane.xlu0 %1082
        %v1084 = vsel %vm423, %v1074, 0.0
        %1085 = vadd.xlane.f32.xlu0 %v1084
        %v1086 = vpop.xlane.xlu0 %1085
        %v1087 = vadd.f32 %v1077, 1e-12
        %v1088 = vadd.f32 %v1080, 1e-12
        %v1089 = vadd.f32 %v1083, 1e-12
        %v1090 = vadd.f32 %v1086, 1e-12
        %v1091 = vrsqrt.pop %v1087
        %v1092 = vmul.f32 %v1091, %v1087
        %v1093 = vmul.f32 %v1092, %v1091
        %v1094 = vmul.f32 0.5, %v1093
        %v1095 = vsub.f32 1.5, %v1094
        %v1096 = vmul.f32 %v1091, %v1095
        %vm1097 = vweird.f32 %v1087
        %vm1098 = vweird.f32 %v1091
        %vm1099 = vmor %vm1097, %vm1098
        %v1100 = vsel %vm1099, %v1091, %v1096
        %v1101 = vrsqrt.pop %v1088
        %v1102 = vmul.f32 %v1101, %v1088
        %v1103 = vmul.f32 %v1102, %v1101
        %v1104 = vmul.f32 0.5, %v1103
        %v1105 = vsub.f32 1.5, %v1104
        %v1106 = vmul.f32 %v1101, %v1105
        %vm1107 = vweird.f32 %v1088
        %vm1108 = vweird.f32 %v1101
        %vm1109 = vmor %vm1107, %vm1108
        %v1110 = vsel %vm1109, %v1101, %v1106
        %v1111 = vrsqrt.pop %v1089
        %v1112 = vmul.f32 %v1111, %v1089
        %v1113 = vmul.f32 %v1112, %v1111
        %v1114 = vmul.f32 0.5, %v1113
        %v1115 = vsub.f32 1.5, %v1114
        %v1116 = vmul.f32 %v1111, %v1115
        %vm1117 = vweird.f32 %v1089
        %vm1118 = vweird.f32 %v1111
        %vm1119 = vmor %vm1117, %vm1118
        %v1120 = vsel %vm1119, %v1111, %v1116
        %v1121 = vrsqrt.pop %v1090
        %v1122 = vmul.f32 %v1121, %v1090
        %v1123 = vmul.f32 %v1122, %v1121
        %v1124 = vmul.f32 0.5, %v1123
        %v1125 = vsub.f32 1.5, %v1124
        %v1126 = vmul.f32 %v1121, %v1125
        %vm1127 = vweird.f32 %v1090
        %vm1128 = vweird.f32 %v1121
        %vm1129 = vmor %vm1127, %vm1128
        %v1130 = vsel %vm1129, %v1121, %v1126
        %v1131 = vmul.f32 %v1067, %v1100
        %v1132 = vmul.f32 %v1068, %v1110
        %v1133 = vmul.f32 %v1069, %v1120
        %v1134 = vmul.f32 %v1070, %v1130
        %v1135 = vpack.c.bf16 %v1132, %v1131
        %v1136 = vpack.c.bf16 %v1134, %v1133
        %v1138 = vsel %vm423, %v1135, 0
        %v1141 = vsel %vm423, %v1136, 0
        %1143 = vmatpush.bf16.msra.mxu0 0
        %1144 = vmatpush.bf16.msra.mxu0 0
        %1145 = vmatpush.bf16.msra.mxu0 0
        %1146 = vmatpush.bf16.msra.mxu0 0
        %1147 = vmatpush.bf16.msra.mxu0 %v558
        %1148 = vmatpush.bf16.msra.mxu0 %v556
        %1149 = vmatpush.bf16.msra.mxu0 %v554
        %1150 = vmatpush.bf16.msra.mxu0 %v552
        %1151 = vmatmul.bf16.gmra.mxu0 %v1138
        %v1152 = vpop.f32.mrf.mxu0
        %v1153 = vadd.f32 0.0, %v1152
        %v1154 = vpop.f32.mrf.mxu0
        %v1155 = vadd.f32 0.0, %v1154
        %1156 = vmatmul.bf16.gmra.mxu0 %v1141
        %v1157 = vpop.f32.mrf.mxu0
        %v1158 = vadd.f32 0.0, %v1157
        %v1159 = vpop.f32.mrf.mxu0
        %v1160 = vadd.f32 0.0, %v1159
        %1161 = vdwg.mxu0
        %1162 = vmatpush.bf16.msra.mxu0 0
        %1163 = vmatpush.bf16.msra.mxu0 0
        %1164 = vmatpush.bf16.msra.mxu0 0
        %1165 = vmatpush.bf16.msra.mxu0 0
        %1166 = vmatpush.bf16.msra.mxu0 %v559
        %1167 = vmatpush.bf16.msra.mxu0 %v557
        %1168 = vmatpush.bf16.msra.mxu0 %v555
        %1169 = vmatpush.bf16.msra.mxu0 %v553
        %1170 = vmatmul.bf16.gmra.mxu0 %v1138
        %v1171 = vpop.f32.mrf.mxu0
        %v1172 = vadd.f32 0.0, %v1171
        %v1173 = vpop.f32.mrf.mxu0
        %v1174 = vadd.f32 0.0, %v1173
        %1175 = vmatmul.bf16.gmra.mxu0 %v1141
        %v1176 = vpop.f32.mrf.mxu0
        %v1177 = vadd.f32 0.0, %v1176
        %v1178 = vpop.f32.mrf.mxu0
        %v1179 = vadd.f32 0.0, %v1178
        %1180 = vdwg.mxu0
        %v1181 = vmax.f32 %v1153, %v1158
        %v1182 = vmax.f32 %v1155, %v1160
        %v1183 = vmax.f32 %v1181, %v1182
        %v1184 = vrot.slane %v1183, 4
        %v1185 = vmax.f32 %v1183, %v1184
        %v1186 = vrot.slane %v1185, 2
        %v1187 = vmax.f32 %v1185, %v1186
        %v1188 = vrot.slane %v1187, 1
        %v1189 = vmax.f32 %v1187, %v1188
        %v1190 = vmax.f32 %v1172, %v1177
        %v1191 = vmax.f32 %v1174, %v1179
        %v1192 = vmax.f32 %v1190, %v1191
        %v1193 = vrot.slane %v1192, 4
        %v1194 = vmax.f32 %v1192, %v1193
        %v1195 = vrot.slane %v1194, 2
        %v1196 = vmax.f32 %v1194, %v1195
        %v1197 = vrot.slane %v1196, 1
        %v1198 = vmax.f32 %v1196, %v1197
        %v1199 = vsub.f32 %v1153, %v1189
        %v1200 = vsub.f32 %v1172, %v1198
        %v1201 = vsub.f32 %v1155, %v1189
        %v1202 = vsub.f32 %v1174, %v1198
        %v1203 = vsub.f32 %v1158, %v1189
        %v1204 = vsub.f32 %v1177, %v1198
        %v1205 = vsub.f32 %v1160, %v1189
        %v1206 = vsub.f32 %v1179, %v1198
        %v1207 = vpack.c.bf16 %v1200, %v1199
        %v1208 = vpack.c.bf16 %v1202, %v1201
        %v1209 = vpack.c.bf16 %v1204, %v1203
        %v1210 = vpack.c.bf16 %v1206, %v1205
        %v1211 = vunpack.c.l.bf16 %v1207
        %v1212 = vunpack.c.h.bf16 %v1207
        %v1213 = vunpack.c.l.bf16 %v1208
        %v1214 = vunpack.c.h.bf16 %v1208
        %v1215 = vunpack.c.l.bf16 %v1209
        %v1216 = vunpack.c.h.bf16 %v1209
        %v1217 = vunpack.c.l.bf16 %v1210
        %v1218 = vunpack.c.h.bf16 %v1210
        %v1219 = vmul.f32 %v1211, 1.442695
        %v1220 = vpow.pop %v1219
        %v1221 = vmul.f32 %v1212, 1.442695
        %v1222 = vpow.pop %v1221
        %v1223 = vmul.f32 %v1213, 1.442695
        %v1224 = vpow.pop %v1223
        %v1225 = vmul.f32 %v1214, 1.442695
        %v1226 = vpow.pop %v1225
        %v1227 = vmul.f32 %v1215, 1.442695
        %v1228 = vpow.pop %v1227
        %v1229 = vmul.f32 %v1216, 1.442695
        %v1230 = vpow.pop %v1229
        %v1231 = vmul.f32 %v1217, 1.442695
        %v1232 = vpow.pop %v1231
        %v1233 = vmul.f32 %v1218, 1.442695
        %v1234 = vpow.pop %v1233
        %v1235 = vpack.c.bf16 %v1222, %v1220
        %v1236 = vpack.c.bf16 %v1226, %v1224
        %v1237 = vpack.c.bf16 %v1230, %v1228
        %v1238 = vpack.c.bf16 %v1234, %v1232
        %v1239 = vunpack.c.l.bf16 %v1235
        %v1240 = vunpack.c.h.bf16 %v1235
        %v1241 = vunpack.c.l.bf16 %v1236
        %v1242 = vunpack.c.h.bf16 %v1236
        %v1243 = vunpack.c.l.bf16 %v1237
        %v1244 = vunpack.c.h.bf16 %v1237
        %v1245 = vunpack.c.l.bf16 %v1238
        %v1246 = vunpack.c.h.bf16 %v1238
        %v1247 = vadd.f32 %v1239, %v1241
        %v1248 = vadd.f32 %v1247, %v1243
        %v1249 = vadd.f32 %v1248, %v1245
        %v1250 = vrot.slane %v1249, 4
        %v1251 = vadd.f32 %v1249, %v1250
        %v1252 = vrot.slane %v1251, 2
        %v1253 = vadd.f32 %v1251, %v1252
        %v1254 = vrot.slane %v1253, 1
        %v1255 = vadd.f32 %v1253, %v1254
        %v1256 = vadd.f32 %v1240, %v1242
        %v1257 = vadd.f32 %v1256, %v1244
        %v1258 = vadd.f32 %v1257, %v1246
        %v1259 = vrot.slane %v1258, 4
        %v1260 = vadd.f32 %v1258, %v1259
        %v1261 = vrot.slane %v1260, 2
        %v1262 = vadd.f32 %v1260, %v1261
        %v1263 = vrot.slane %v1262, 1
        %v1264 = vadd.f32 %v1262, %v1263
        %v1265 = vrcp.pop %v1255
        %v1266 = vrcp.pop %v1264
        %v1267 = vpack.c.bf16 %v1266, %v1265
        %v1268 = vunpack.c.l.bf16 %v1267
        %v1269 = vunpack.c.h.bf16 %v1267
        %v1270 = vmul.f32 %v1239, %v1268
        %v1271 = vmul.f32 %v1240, %v1269
        %v1272 = vmul.f32 %v1241, %v1268
        %v1273 = vmul.f32 %v1242, %v1269
        %v1274 = vmul.f32 %v1243, %v1268
        %v1275 = vmul.f32 %v1244, %v1269
        %v1276 = vmul.f32 %v1245, %v1268
        %v1277 = vmul.f32 %v1246, %v1269
        %v1278 = vpack.c.bf16 %v1272, %v1270
        %v1279 = vpack.c.bf16 %v1273, %v1271
        %v1280 = vpack.c.bf16 %v1276, %v1274
        %v1281 = vpack.c.bf16 %v1277, %v1275
        %1282 = vmatpush.bf16.xpose.msra.mxu0 0
        %1283 = vmatpush.bf16.xpose.msra.mxu0 0
        %1284 = vmatpush.bf16.xpose.msra.mxu0 0
        %1285 = vmatpush.bf16.xpose.msra.mxu0 %v716
        %1286 = vmatpush.bf16.xpose.msra.mxu0 %v558
        %1287 = vmatpush.bf16.xpose.msra.mxu0 %v556
        %1288 = vmatpush.bf16.xpose.msra.mxu0 %v554
        %1289 = vmatpush.bf16.xpose.msra.mxu0 %v552
        %1290 = vmatmul.bf16.gmra.mxu0 %v1278
        %v1291 = vpop.f32.mrf.mxu0
        %v1292 = vadd.f32 0.0, %v1291
        %v1293 = vpop.f32.mrf.mxu0
        %v1294 = vadd.f32 0.0, %v1293
        %1295 = vmatmul.bf16.gmra.mxu0 %v1280
        %v1296 = vpop.f32.mrf.mxu0
        %v1297 = vadd.f32 0.0, %v1296
        %v1298 = vpop.f32.mrf.mxu0
        %v1299 = vadd.f32 0.0, %v1298
        %1300 = vdwg.mxu0
        %1301 = vmatpush.bf16.xpose.msra.mxu0 0
        %1302 = vmatpush.bf16.xpose.msra.mxu0 0
        %1303 = vmatpush.bf16.xpose.msra.mxu0 0
        %1304 = vmatpush.bf16.xpose.msra.mxu0 %v717
        %1305 = vmatpush.bf16.xpose.msra.mxu0 %v559
        %1306 = vmatpush.bf16.xpose.msra.mxu0 %v557
        %1307 = vmatpush.bf16.xpose.msra.mxu0 %v555
        %1308 = vmatpush.bf16.xpose.msra.mxu0 %v553
        %1309 = vmatmul.bf16.gmra.mxu0 %v1279
        %v1310 = vpop.f32.mrf.mxu0
        %v1311 = vadd.f32 %v1292, %v1310
        %v1312 = vpop.f32.mrf.mxu0
        %v1313 = vadd.f32 %v1294, %v1312
        %1314 = vmatmul.bf16.gmra.mxu0 %v1281
        %v1315 = vpop.f32.mrf.mxu0
        %v1316 = vadd.f32 %v1297, %v1315
        %v1317 = vpop.f32.mrf.mxu0
        %v1318 = vadd.f32 %v1299, %v1317
        %1319 = vdwg.mxu0
        %v1320 = vadd.f32 %v1311, 1e-06
        %v1321 = vadd.f32 %v1313, 1e-06
        %v1322 = vadd.f32 %v1316, 1e-06
        %v1323 = vadd.f32 %v1318, 1e-06
        %v1324 = vrcp.pop %v1320
        %v1325 = vrcp.pop %v1321
        %v1326 = vrcp.pop %v1322
        %v1327 = vrcp.pop %v1323
        %1329 = vset.pattern.permute.xlu0 64
        %1330 = vperm.xlu0 %1329, %v1324
        %v1331 = vpop.permute.xlu0 %1330
        %1334 = vset.pattern.permute.xlu0 64
        %1335 = vperm.xlu0 %1334, %v1325
        %v1336 = vpop.permute.xlu0 %1335
        %1339 = vset.pattern.permute.xlu0 64
        %1340 = vperm.xlu0 %1339, %v1326
        %v1341 = vpop.permute.xlu0 %1340
        %1344 = vset.pattern.permute.xlu0 64
        %1345 = vperm.xlu0 %1344, %v1327
        %v1346 = vpop.permute.xlu0 %1345
        %v1348 = vmul.f32 %v1311, %v1331
        %v1349 = vmul.f32 %v1313, %v1336
        %v1350 = vmul.f32 %v1316, %v1341
        %v1351 = vmul.f32 %v1318, %v1346
        %v1352 = vmul.f32 %v1348, %v1348
        %v1353 = vmul.f32 %v1349, %v1349
        %v1354 = vmul.f32 %v1350, %v1350
        %v1355 = vmul.f32 %v1351, %v1351
        %v1356 = vsel %vm423, %v1352, 0.0
        %1357 = vadd.xlane.f32.xlu0 %v1356
        %v1358 = vpop.xlane.xlu0 %1357
        %v1359 = vsel %vm423, %v1353, 0.0
        %1360 = vadd.xlane.f32.xlu0 %v1359
        %v1361 = vpop.xlane.xlu0 %1360
        %v1362 = vsel %vm423, %v1354, 0.0
        %1363 = vadd.xlane.f32.xlu0 %v1362
        %v1364 = vpop.xlane.xlu0 %1363
        %v1365 = vsel %vm423, %v1355, 0.0
        %1366 = vadd.xlane.f32.xlu0 %v1365
        %v1367 = vpop.xlane.xlu0 %1366
        %v1368 = vadd.f32 %v1358, 1e-12
        %v1369 = vadd.f32 %v1361, 1e-12
        %v1370 = vadd.f32 %v1364, 1e-12
        %v1371 = vadd.f32 %v1367, 1e-12
        %v1372 = vrsqrt.pop %v1368
        %v1373 = vmul.f32 %v1372, %v1368
        %v1374 = vmul.f32 %v1373, %v1372
        %v1375 = vmul.f32 0.5, %v1374
        %v1376 = vsub.f32 1.5, %v1375
        %v1377 = vmul.f32 %v1372, %v1376
        %vm1378 = vweird.f32 %v1368
        %vm1379 = vweird.f32 %v1372
        %vm1380 = vmor %vm1378, %vm1379
        %v1381 = vsel %vm1380, %v1372, %v1377
        %v1382 = vrsqrt.pop %v1369
        %v1383 = vmul.f32 %v1382, %v1369
        %v1384 = vmul.f32 %v1383, %v1382
        %v1385 = vmul.f32 0.5, %v1384
        %v1386 = vsub.f32 1.5, %v1385
        %v1387 = vmul.f32 %v1382, %v1386
        %vm1388 = vweird.f32 %v1369
        %vm1389 = vweird.f32 %v1382
        %vm1390 = vmor %vm1388, %vm1389
        %v1391 = vsel %vm1390, %v1382, %v1387
        %v1392 = vrsqrt.pop %v1370
        %v1393 = vmul.f32 %v1392, %v1370
        %v1394 = vmul.f32 %v1393, %v1392
        %v1395 = vmul.f32 0.5, %v1394
        %v1396 = vsub.f32 1.5, %v1395
        %v1397 = vmul.f32 %v1392, %v1396
        %vm1398 = vweird.f32 %v1370
        %vm1399 = vweird.f32 %v1392
        %vm1400 = vmor %vm1398, %vm1399
        %v1401 = vsel %vm1400, %v1392, %v1397
        %v1402 = vrsqrt.pop %v1371
        %v1403 = vmul.f32 %v1402, %v1371
        %v1404 = vmul.f32 %v1403, %v1402
        %v1405 = vmul.f32 0.5, %v1404
        %v1406 = vsub.f32 1.5, %v1405
        %v1407 = vmul.f32 %v1402, %v1406
        %vm1408 = vweird.f32 %v1371
        %vm1409 = vweird.f32 %v1402
        %vm1410 = vmor %vm1408, %vm1409
        %v1411 = vsel %vm1410, %v1402, %v1407
        %v1412 = vmul.f32 %v1348, %v1381
        %v1413 = vmul.f32 %v1349, %v1391
        %v1414 = vmul.f32 %v1350, %v1401
        %v1415 = vmul.f32 %v1351, %v1411
        %1416 = vxpose.xlu0.b32.start [1/16] %v1412, 128
        %1417 = vxpose.xlu0.b32.cont [2/16] %v1413, 128
        %1418 = vxpose.xlu0.b32.cont [3/16] %v1414, 128
        %1419 = vxpose.xlu0.b32.cont [4/16] %v1415, 128
        %1420 = vxpose.xlu0.b32.cont [5/16] 0.0, 128
        %1421 = vxpose.xlu0.b32.cont [6/16] 0.0, 128
        %1422 = vxpose.xlu0.b32.cont [7/16] 0.0, 128
        %1423 = vxpose.xlu0.b32.cont [8/16] 0.0, 128
        %1424 = vxpose.xlu0.b32.cont [9/16] 0.0, 128
        %1425 = vxpose.xlu0.b32.cont [10/16] 0.0, 128
        %1426 = vxpose.xlu0.b32.cont [11/16] 0.0, 128
        %1427 = vxpose.xlu0.b32.cont [12/16] 0.0, 128
        %1428 = vxpose.xlu0.b32.cont [13/16] 0.0, 128
        %1429 = vxpose.xlu0.b32.cont [14/16] 0.0, 128
        %1430 = vxpose.xlu0.b32.cont [15/16] 0.0, 128
        %1431 = vxpose.xlu0.b32.end [16/16] 0.0, 128
        %v1432 = vpop.trf.xlu0
        %v1433 = vpop.trf.xlu0
        %v1434 = vpop.trf.xlu0
        %v1435 = vpop.trf.xlu0
        %v1436 = vpop.trf.xlu0
        %v1437 = vpop.trf.xlu0
        %v1438 = vpop.trf.xlu0
        %v1439 = vpop.trf.xlu0
        %v1440 = vpop.trf.xlu0
        %v1441 = vpop.trf.xlu0
        %v1442 = vpop.trf.xlu0
        %v1443 = vpop.trf.xlu0
        %v1444 = vpop.trf.xlu0
        %v1445 = vpop.trf.xlu0
        %v1446 = vpop.trf.xlu0
        %v1447 = vpop.trf.xlu0
        %v1448 = vpack.c.bf16 %v1433, %v1432
        %v1449 = vpack.c.bf16 %v1435, %v1434
        %v1450 = vpack.c.bf16 %v1437, %v1436
        %v1451 = vpack.c.bf16 %v1439, %v1438
        %vm1452 = vcmask 261120
        %v1454 = vsel %vm1452, %v1448, 0
        %v1457 = vsel %vm1452, %v1449, 0
        %v1460 = vsel %vm1452, %v1450, 0
        %v1463 = vsel %vm1452, %v1451, 0
        %1465 = vmatpush.bf16.msra.mxu0 0
        %1466 = vmatpush.bf16.msra.mxu0 0
        %1467 = vmatpush.bf16.msra.mxu0 0
        %1468 = vmatpush.bf16.msra.mxu0 0
        %1469 = vmatpush.bf16.msra.mxu0 0
        %1470 = vmatpush.bf16.msra.mxu0 0
        %1471 = vmatpush.bf16.msra.mxu0 %v1280
        %1472 = vmatpush.bf16.msra.mxu0 %v1278
        %1473 = vmatmul.bf16.gmra.mxu0 %v1454
        %v1474 = vpop.f32.mrf.mxu0
        %v1475 = vadd.f32 0.0, %v1474
        %v1476 = vpop.f32.mrf.mxu0
        %v1477 = vadd.f32 0.0, %v1476
        %1478 = vmatmul.bf16.gmra.mxu0 %v1457
        %v1479 = vpop.f32.mrf.mxu0
        %v1480 = vadd.f32 0.0, %v1479
        %v1481 = vpop.f32.mrf.mxu0
        %v1482 = vadd.f32 0.0, %v1481
        %1483 = vmatmul.bf16.gmra.mxu0 %v1460
        %v1484 = vpop.f32.mrf.mxu0
        %v1485 = vadd.f32 0.0, %v1484
        %v1486 = vpop.f32.mrf.mxu0
        %v1487 = vadd.f32 0.0, %v1486
        %1488 = vmatmul.bf16.gmra.mxu0 %v1463
        %v1489 = vpop.f32.mrf.mxu0
        %v1490 = vadd.f32 0.0, %v1489
        %v1491 = vpop.f32.mrf.mxu0
        %v1492 = vadd.f32 0.0, %v1491
        %1493 = vdwg.mxu0
        %1494 = vmatpush.bf16.msra.mxu0 0
        %1495 = vmatpush.bf16.msra.mxu0 0
        %1496 = vmatpush.bf16.msra.mxu0 0
        %1497 = vmatpush.bf16.msra.mxu0 0
        %1498 = vmatpush.bf16.msra.mxu0 0
        %1499 = vmatpush.bf16.msra.mxu0 0
        %1500 = vmatpush.bf16.msra.mxu0 %v1281
        %1501 = vmatpush.bf16.msra.mxu0 %v1279
        %1502 = vmatmul.bf16.gmra.mxu0 %v1454
        %v1503 = vpop.f32.mrf.mxu0
        %v1504 = vadd.f32 0.0, %v1503
        %v1505 = vpop.f32.mrf.mxu0
        %v1506 = vadd.f32 0.0, %v1505
        %1507 = vmatmul.bf16.gmra.mxu0 %v1457
        %v1508 = vpop.f32.mrf.mxu0
        %v1509 = vadd.f32 0.0, %v1508
        %v1510 = vpop.f32.mrf.mxu0
        %v1511 = vadd.f32 0.0, %v1510
        %1512 = vmatmul.bf16.gmra.mxu0 %v1460
        %v1513 = vpop.f32.mrf.mxu0
        %v1514 = vadd.f32 0.0, %v1513
        %v1515 = vpop.f32.mrf.mxu0
        %v1516 = vadd.f32 0.0, %v1515
        %1517 = vmatmul.bf16.gmra.mxu0 %v1463
        %v1518 = vpop.f32.mrf.mxu0
        %v1519 = vadd.f32 0.0, %v1518
        %v1520 = vpop.f32.mrf.mxu0
        %v1521 = vadd.f32 0.0, %v1520
        %1522 = vdwg.mxu0
        %v1523 = vmax.f32 %v1475, 0.0
        %v1524 = vmax.f32 %v1504, 0.0
        %v1525 = vmax.f32 %v1477, 0.0
        %v1526 = vmax.f32 %v1506, 0.0
        %v1527 = vmax.f32 %v1480, 0.0
        %v1528 = vmax.f32 %v1509, 0.0
        %v1529 = vmax.f32 %v1482, 0.0
        %v1530 = vmax.f32 %v1511, 0.0
        %v1531 = vmax.f32 %v1485, 0.0
        %v1532 = vmax.f32 %v1514, 0.0
        %v1533 = vmax.f32 %v1487, 0.0
        %v1534 = vmax.f32 %v1516, 0.0
        %v1535 = vmax.f32 %v1490, 0.0
        %v1536 = vmax.f32 %v1519, 0.0
        %v1537 = vmax.f32 %v1492, 0.0
        %v1538 = vmax.f32 %v1521, 0.0
        %v1539 = vld [vmem:[%s4] sm:$0xf]
        %v1540 = vld [vmem:[%s4 + $0x4] sm:$0xf]
        %v1541 = vld [vmem:[%s4 + $0x8] sm:$0xf]
        %v1542 = vld [vmem:[%s4 + $0xc] sm:$0xf]
        %v1543 = vld [vmem:[%s4 + $0x10] sm:$0xf]
        %v1544 = vld [vmem:[%s4 + $0x14] sm:$0xf]
        %v1545 = vld [vmem:[%s4 + $0x18] sm:$0xf]
        %v1546 = vld [vmem:[%s4 + $0x1c] sm:$0xf]
        %v1547 = vpack.c.bf16 %v1525, %v1523
        %v1548 = vpack.c.bf16 %v1526, %v1524
        %v1549 = vpack.c.bf16 %v1529, %v1527
        %v1550 = vpack.c.bf16 %v1530, %v1528
        %v1551 = vpack.c.bf16 %v1533, %v1531
        %v1552 = vpack.c.bf16 %v1534, %v1532
        %v1553 = vpack.c.bf16 %v1537, %v1535
        %v1554 = vpack.c.bf16 %v1538, %v1536
        %v1555 = vld [vmem:[%s5] sm:$0xff]
        %v1556 = vld [vmem:[%s5 + $0x8] sm:$0xff]
        %v1557 = vld [vmem:[%s5 + $0x10] sm:$0xff]
        %v1558 = vld [vmem:[%s5 + $0x18] sm:$0xff]
        %v1559 = vld [vmem:[%s5 + $0x20] sm:$0xff]
        %v1560 = vld [vmem:[%s5 + $0x28] sm:$0xff]
        %v1561 = vld [vmem:[%s5 + $0x30] sm:$0xff]
        %v1562 = vld [vmem:[%s5 + $0x38] sm:$0xff]
        %1564 = vset.pattern.permute.xlu0 0
        %1565 = vperm.xlu0 %1564, %v1555
        %v1566 = vpop.permute.xlu0 %1565
        %1569 = vset.pattern.permute.xlu0 0
        %1570 = vperm.xlu0 %1569, %v1556
        %v1571 = vpop.permute.xlu0 %1570
        %1574 = vset.pattern.permute.xlu0 0
        %1575 = vperm.xlu0 %1574, %v1557
        %v1576 = vpop.permute.xlu0 %1575
        %1579 = vset.pattern.permute.xlu0 0
        %1580 = vperm.xlu0 %1579, %v1558
        %v1581 = vpop.permute.xlu0 %1580
        %1584 = vset.pattern.permute.xlu0 0
        %1585 = vperm.xlu0 %1584, %v1559
        %v1586 = vpop.permute.xlu0 %1585
        %1589 = vset.pattern.permute.xlu0 0
        %1590 = vperm.xlu0 %1589, %v1560
        %v1591 = vpop.permute.xlu0 %1590
        %1594 = vset.pattern.permute.xlu0 0
        %1595 = vperm.xlu0 %1594, %v1561
        %v1596 = vpop.permute.xlu0 %1595
        %1599 = vset.pattern.permute.xlu0 0
        %1600 = vperm.xlu0 %1599, %v1562
        %v1601 = vpop.permute.xlu0 %1600
        %v1611 = vunpack.c.l.b16 %v1539
        %v1612 = vunpack.c.l.b16 %v1540
        %v1613 = vunpack.c.l.b16 %v1541
        %v1614 = vunpack.c.l.b16 %v1542
        %v1615 = vunpack.c.l.b16 %v1543
        %v1616 = vunpack.c.l.b16 %v1544
        %v1617 = vunpack.c.l.b16 %v1545
        %v1618 = vunpack.c.l.b16 %v1546
        %v1619 = vpack.c.b16 %v1612, %v1611
        %v1620 = vpack.c.b16 %v1614, %v1613
        %v1621 = vpack.c.b16 %v1616, %v1615
        %v1622 = vpack.c.b16 %v1618, %v1617
        %v1624 = vsel %vm423, %v1619, 0
        %v1627 = vsel %vm423, %v1620, 0
        %v1630 = vsel %vm423, %v1621, 0
        %v1633 = vsel %vm423, %v1622, 0
        %1635 = vmatpush.bf16.msra.mxu0 0
        %1636 = vmatpush.bf16.msra.mxu0 0
        %1637 = vmatpush.bf16.msra.mxu0 0
        %1638 = vmatpush.bf16.msra.mxu0 0
        %1639 = vmatpush.bf16.msra.mxu0 %v1553
        %1640 = vmatpush.bf16.msra.mxu0 %v1551
        %1641 = vmatpush.bf16.msra.mxu0 %v1549
        %1642 = vmatpush.bf16.msra.mxu0 %v1547
        %1643 = vmatmul.bf16.gmra.mxu0 %v1624
        %v1644 = vpop.f32.mrf.mxu0
        %v1645 = vadd.f32 %v1566, %v1644
        %v1646 = vpop.f32.mrf.mxu0
        %v1647 = vadd.f32 %v1571, %v1646
        %1648 = vmatmul.bf16.gmra.mxu0 %v1627
        %v1649 = vpop.f32.mrf.mxu0
        %v1650 = vadd.f32 %v1576, %v1649
        %v1651 = vpop.f32.mrf.mxu0
        %v1652 = vadd.f32 %v1581, %v1651
        %1653 = vmatmul.bf16.gmra.mxu0 %v1630
        %v1654 = vpop.f32.mrf.mxu0
        %v1655 = vadd.f32 %v1586, %v1654
        %v1656 = vpop.f32.mrf.mxu0
        %v1657 = vadd.f32 %v1591, %v1656
        %1658 = vmatmul.bf16.gmra.mxu0 %v1633
        %v1659 = vpop.f32.mrf.mxu0
        %v1660 = vadd.f32 %v1596, %v1659
        %v1661 = vpop.f32.mrf.mxu0
        %v1662 = vadd.f32 %v1601, %v1661
        %1663 = vdwg.mxu0
        %1664 = vmatpush.bf16.msra.mxu0 0
        %1665 = vmatpush.bf16.msra.mxu0 0
        %1666 = vmatpush.bf16.msra.mxu0 0
        %1667 = vmatpush.bf16.msra.mxu0 0
        %1668 = vmatpush.bf16.msra.mxu0 %v1554
        %1669 = vmatpush.bf16.msra.mxu0 %v1552
        %1670 = vmatpush.bf16.msra.mxu0 %v1550
        %1671 = vmatpush.bf16.msra.mxu0 %v1548
        %1672 = vmatmul.bf16.gmra.mxu0 %v1624
        %v1673 = vpop.f32.mrf.mxu0
        %v1674 = vadd.f32 %v1566, %v1673
        %v1675 = vpop.f32.mrf.mxu0
        %v1676 = vadd.f32 %v1571, %v1675
        %1677 = vmatmul.bf16.gmra.mxu0 %v1627
        %v1678 = vpop.f32.mrf.mxu0
        %v1679 = vadd.f32 %v1576, %v1678
        %v1680 = vpop.f32.mrf.mxu0
        %v1681 = vadd.f32 %v1581, %v1680
        %1682 = vmatmul.bf16.gmra.mxu0 %v1630
        %v1683 = vpop.f32.mrf.mxu0
        %v1684 = vadd.f32 %v1586, %v1683
        %v1685 = vpop.f32.mrf.mxu0
        %v1686 = vadd.f32 %v1591, %v1685
        %1687 = vmatmul.bf16.gmra.mxu0 %v1633
        %v1688 = vpop.f32.mrf.mxu0
        %v1689 = vadd.f32 %v1596, %v1688
        %v1690 = vpop.f32.mrf.mxu0
        %v1691 = vadd.f32 %v1601, %v1690
        %1692 = vdwg.mxu0
        %v1693 = vadd.f32 %v1645, %v322
        %v1694 = vadd.f32 %v1674, %v323
        %v1695 = vadd.f32 %v1647, %v324
        %v1696 = vadd.f32 %v1676, %v325
        %v1697 = vadd.f32 %v1650, %v326
        %v1698 = vadd.f32 %v1679, %v327
        %v1699 = vadd.f32 %v1652, %v328
        %v1700 = vadd.f32 %v1681, %v329
        %v1701 = vadd.f32 %v1655, %v330
        %v1702 = vadd.f32 %v1684, %v331
        %v1703 = vadd.f32 %v1657, %v332
        %v1704 = vadd.f32 %v1686, %v333
        %v1705 = vadd.f32 %v1660, %v334
        %v1706 = vadd.f32 %v1689, %v335
        %v1707 = vadd.f32 %v1662, %v336
        %v1708 = vadd.f32 %v1691, %v337
        %v1709 = vmax.f32 %v1693, 0.0
        %v1710 = vmax.f32 %v1694, 0.0
        %v1711 = vmax.f32 %v1695, 0.0
        %v1712 = vmax.f32 %v1696, 0.0
        %v1713 = vmax.f32 %v1697, 0.0
        %v1714 = vmax.f32 %v1698, 0.0
        %v1715 = vmax.f32 %v1699, 0.0
        %v1716 = vmax.f32 %v1700, 0.0
        %v1717 = vmax.f32 %v1701, 0.0
        %v1718 = vmax.f32 %v1702, 0.0
        %v1719 = vmax.f32 %v1703, 0.0
        %v1720 = vmax.f32 %v1704, 0.0
        %v1721 = vmax.f32 %v1705, 0.0
        %v1722 = vmax.f32 %v1706, 0.0
        %v1723 = vmax.f32 %v1707, 0.0
        %v1724 = vmax.f32 %v1708, 0.0
        %v1725 = vpack.c.bf16 %v1710, %v1709
        %v1726 = vpack.c.bf16 %v1712, %v1711
        %v1727 = vpack.c.bf16 %v1714, %v1713
        %v1728 = vpack.c.bf16 %v1716, %v1715
        %v1729 = vpack.c.bf16 %v1718, %v1717
        %v1730 = vpack.c.bf16 %v1720, %v1719
        %v1731 = vpack.c.bf16 %v1722, %v1721
        %v1732 = vpack.c.bf16 %v1724, %v1723
        %1733 = vst [vmem:[%s299] sm:$0xff] %v1725
        %1734 = vst [vmem:[%s299 + $0x8] sm:$0xff] %v1726
        %1735 = vst [vmem:[%s299 + $0x10] sm:$0xff] %v1727
        %1736 = vst [vmem:[%s299 + $0x18] sm:$0xff] %v1728
        %1737 = vst [vmem:[%s299 + $0x20] sm:$0xff] %v1729
        %1738 = vst [vmem:[%s299 + $0x28] sm:$0xff] %v1730
        %1739 = vst [vmem:[%s299 + $0x30] sm:$0xff] %v1731
        %1740 = vst [vmem:[%s299 + $0x38] sm:$0xff] %v1732
        %1741 = vst.msk [vmem:[%s311] sm:$0xff] %vm1452, %v1432
        %1742 = vst.msk [vmem:[%s311 + $0x8] sm:$0xff] %vm1452, %v1433
        %1743 = vst.msk [vmem:[%s311 + $0x10] sm:$0xff] %vm1452, %v1434
        %1744 = vst.msk [vmem:[%s311 + $0x18] sm:$0xff] %vm1452, %v1435
        %1745 = vst.msk [vmem:[%s311 + $0x20] sm:$0xff] %vm1452, %v1436
        %1746 = vst.msk [vmem:[%s311 + $0x28] sm:$0xff] %vm1452, %v1437
        %1747 = vst.msk [vmem:[%s311 + $0x30] sm:$0xff] %vm1452, %v1438
        %1748 = vst.msk [vmem:[%s311 + $0x38] sm:$0xff] %vm1452, %v1439
        %s1749 = sand.u32 %s164, 1
        %s1750 = scalar_lea.sflag [#allocation4], %s1749
        %s1751 = sand.u32 %s164, 1
        %s1752 = smul.addr %s1751, 64
        %s1753 = scalar_lea.vmem [#allocation5], %s1752
        %p1754 = scmp.lt.s32.totalorder %s25, 1
        %s1755 = scalar_select %p1754, %s25, 1
        %s1756 = smul.addr %s1755, 8
        %s1757 = smul.addr %s1756, 8
        %s1758 = scalar_lea.vmem %s7, %s1757
        // Predicated region
        $region49: #{tpu_custom_call.1} parent=43 // pred_check
          %p1759 = pneg %p174
        $region50: #{tpu_custom_call.1} parent=43 // pred_check_branch
          %1761 = sbr.rel (%p1759) target = $region52
        $region51: #{tpu_custom_call.1} parent=43 // pred_region
          %1763 = vsyncadd %s1750, 0
          %s1764 = smul.addr %s25, 16
          %s1765 = smul.addr %s1764, 4
          %s1766 = scalar_lea.hbm %s6, %s1765
          %s1767 = sshll.u32 %s1753, 4
          %s1768 = int_to_ptr.vmem [resolvable:$true] %s1767
          %s1769 = sshll.u32 %s1766, 4
          %s1770 = int_to_ptr.hbm [resolvable:$true] %s1769
          %1775 = dma.vmem_to_hbm [thread:$0]  %s1768, 1024, %s1770, %s1750, 128, 128, 8
        $region52: #{tpu_custom_call.1} parent=43 // pred_fallthru
          _
        // Predicated region
        $region53: #{tpu_custom_call.1} parent=43 // pred_check
          %p1776 = pneg %p200
        $region54: #{tpu_custom_call.1} parent=43 // pred_check_branch
          %1778 = sbr.rel (%p1776) target = $region56
        $region55: #{tpu_custom_call.1} parent=43 // pred_region
          _
        $region56: #{tpu_custom_call.1} parent=43 // pred_fallthru
          _
      $region44: #{tpu_custom_call.1} parent=5 // pred_fallthru
        _
      %p1779 = scmp.le.s32.totalorder 2, %s20
      // Predicated region
      $region57: #{tpu_custom_call.1} parent=5 // pred_check
        %p1780 = pneg %p1779
      $region58: #{tpu_custom_call.1} parent=5 // pred_check_branch
        %1782 = sbr.rel (%p1780) target = $region60
      $region59: #{tpu_custom_call.1} parent=5 // pred_region
        %s1783 = ssub.s32 %s20, 2
        // Predicated region
        $region61: #{tpu_custom_call.1} parent=59 // pred_check
          %p1784 = pneg %p180
        $region62: #{tpu_custom_call.1} parent=59 // pred_check_branch
          %1786 = sbr.rel (%p1784) target = $region64
        $region63: #{tpu_custom_call.1} parent=59 // pred_region
          %s1787 = sand.u32 %s165, 1
          %s1788 = scalar_lea.sflag [#allocation4], %s1787
          %s1789 = sand.u32 %s165, 1
          %s1790 = smul.addr %s1789, 64
          %s1791 = scalar_lea.vmem [#allocation5], %s1790
          %1793 = dma.done %s1788, 1024
        $region64: #{tpu_custom_call.1} parent=59 // pred_fallthru
          _
        // Predicated region
        $region65: #{tpu_custom_call.1} parent=59 // pred_check
          %p1794 = pneg %p206
        $region66: #{tpu_custom_call.1} parent=59 // pred_check_branch
          %1796 = sbr.rel (%p1794) target = $region68
        $region67: #{tpu_custom_call.1} parent=59 // pred_region
          %p1797 = scmp.lt.s32.totalorder %s26, 1
          %s1798 = scalar_select %p1797, %s26, 1
          %s1799 = smul.addr %s1798, 8
          %s1800 = smul.addr %s1799, 8
          %s1801 = scalar_lea.vmem %s7, %s1800
        $region68: #{tpu_custom_call.1} parent=59 // pred_fallthru
          _
      $region60: #{tpu_custom_call.1} parent=5 // pred_fallthru
        _
    $region6: #{tpu_custom_call.1} parent=1 // loop_footer
      %s24 = sadd.s32 1, %s20
    $region7: #{tpu_custom_call.1} parent=1 // loop_footer_branch
      %19 = sbr.rel target = $region3
    $region8: #{tpu_custom_call.1} parent=1 // loop_exit
      _
    %1802 = vsyncpa [#allocation3], 1
    %s1803 = scalar_lea.sflag [#allocation3], 1
    %1804 = vsyncpa %s1803, 1
    %1805 = vsyncpa [#allocation4], 1
    %s1806 = scalar_lea.sflag [#allocation4], 1
    %1807 = vsyncpa %s1806, 1

</llo_original>
